<compile_context>
chip_gen: v6e
topology: v6e:2x2x1
jax: 0.10.0
libtpu: 0.0.40
codegen_flags: <defaults>
</compile_context>

<pallas_src>
import functools

import jax
import jax.numpy as jnp
from jax.experimental import pallas as pl
from jax.experimental.pallas import tpu as pltpu  # noqa: F401 (used when tiling production shapes)

BN_EPS = 1e-5
LANE = 128


# ----------------------------------------------------------------------------
# Fused kernel: both symmetric passes in one body (4 independent chains).
# ----------------------------------------------------------------------------
def _byol_kernel(
    x0_ref, x1_ref,                                         # (B, Cp) f32
    bb_w_ref, bb_b_ref,                                      # (Cp,Fp) bf16, (1,Fp) f32
    pj_w1_ref, pj_b1_ref, pj_g_ref, pj_bt_ref, pj_w2_ref, pj_b2_ref,
    pd_w1_ref, pd_b1_ref, pd_g_ref, pd_bt_ref, pd_w2_ref, pd_b2_ref,
    m1bb_w_ref, m1bb_b_ref,                                  # momentum (pass 0)
    m1pj_w1_ref, m1pj_b1_ref, m1pj_g_ref, m1pj_bt_ref, m1pj_w2_ref, m1pj_b2_ref,
    m2bb_w_ref, m2bb_b_ref,                                  # momentum (pass 1)
    m2pj_w1_ref, m2pj_b1_ref, m2pj_g_ref, m2pj_bt_ref, m2pj_w2_ref, m2pj_b2_ref,
    p_out_ref, z_out_ref,                                    # (2, B, Op) f32 each
):
    def linear(x_f32, w_ref, b_ref):
        # bf16 operands on the MXU, f32 accumulate; bias add in f32 on the VPU.
        return jnp.dot(x_f32.astype(jnp.bfloat16), w_ref[...],
                       preferred_element_type=jnp.float32) + b_ref[...]

    def mlp(x_f32, w1_ref, b1_ref, g_ref, bt_ref, w2_ref, b2_ref):
        h = linear(x_f32, w1_ref, b1_ref)
        # BatchNorm1d, training mode, biased variance over the batch (sublane)
        # axis.  Single-pass stats; variance clamped against f32 cancellation.
        mu = jnp.mean(h, axis=0, keepdims=True)
        var = jnp.maximum(jnp.mean(h * h, axis=0, keepdims=True) - mu * mu, 0.0)
        scale = g_ref[...] * jax.lax.rsqrt(var + BN_EPS)     # EUP rsqrt
        shift = bt_ref[...] - mu * scale
        hn = jnp.maximum(h * scale + shift, 0.0)             # fused BN + ReLU
        return linear(hn, w2_ref, b2_ref)

    # ---- pass 0: online(x0) -> p0 ; momentum_1(x1) -> z1 ----
    f0 = linear(x0_ref[...], bb_w_ref, bb_b_ref)
    z0_on = mlp(f0, pj_w1_ref, pj_b1_ref, pj_g_ref, pj_bt_ref, pj_w2_ref, pj_b2_ref)
    p_out_ref[0] = mlp(z0_on, pd_w1_ref, pd_b1_ref, pd_g_ref, pd_bt_ref,
                       pd_w2_ref, pd_b2_ref)
    fm1 = linear(x1_ref[...], m1bb_w_ref, m1bb_b_ref)
    z_out_ref[0] = mlp(fm1, m1pj_w1_ref, m1pj_b1_ref, m1pj_g_ref, m1pj_bt_ref,
                       m1pj_w2_ref, m1pj_b2_ref)

    # ---- pass 1: online(x1) -> p1 ; momentum_2(x0) -> z0 ----
    f1 = linear(x1_ref[...], bb_w_ref, bb_b_ref)
    z1_on = mlp(f1, pj_w1_ref, pj_b1_ref, pj_g_ref, pj_bt_ref, pj_w2_ref, pj_b2_ref)
    p_out_ref[1] = mlp(z1_on, pd_w1_ref, pd_b1_ref, pd_g_ref, pd_bt_ref,
                       pd_w2_ref, pd_b2_ref)
    fm0 = linear(x0_ref[...], m2bb_w_ref, m2bb_b_ref)
    z_out_ref[1] = mlp(fm0, m2pj_w1_ref, m2pj_b1_ref, m2pj_g_ref, m2pj_bt_ref,
                       m2pj_w2_ref, m2pj_b2_ref)


# ----------------------------------------------------------------------------
# Layout helpers + one-time conversion to persistent kernel layout
# ----------------------------------------------------------------------------
def _round_up(n, m):
    return ((n + m - 1) // m) * m


def _pad_to(a, shape):
    return jnp.pad(a, [(0, t - s) for s, t in zip(a.shape, shape)])


def _prep_backbone(bb):
    f, c = bb["w"].shape
    cp, fp = _round_up(c, LANE), _round_up(f, LANE)
    return {
        "w": _pad_to(bb["w"].T, (cp, fp)).astype(jnp.float32),   # (Cp, Fp)
        "b": _pad_to(bb["b"].reshape(1, f), (1, fp)).astype(jnp.float32),
    }


def _prep_head(head):
    h, din = head["w1"].shape
    dout = head["w2"].shape[0]
    dinp, hp, doutp = (_round_up(n, LANE) for n in (din, h, dout))
    return {
        "w1": _pad_to(head["w1"].T, (dinp, hp)).astype(jnp.float32),
        "b1": _pad_to(head["b1"].reshape(1, h), (1, hp)).astype(jnp.float32),
        "gamma": _pad_to(head["gamma"].reshape(1, h), (1, hp)).astype(jnp.float32),
        "beta": _pad_to(head["beta"].reshape(1, h), (1, hp)).astype(jnp.float32),
        "w2": _pad_to(head["w2"].T, (hp, doutp)).astype(jnp.float32),
        "b2": _pad_to(head["b2"].reshape(1, dout), (1, doutp)).astype(jnp.float32),
    }


def prepare_kernel_params(params):
    """One-time: PyTorch-layout -> persistent kernel layout (f32 masters)."""
    return {
        "backbone": _prep_backbone(params["backbone"]),
        "projection_head": _prep_head(params["projection_head"]),
        "prediction_head": _prep_head(params["prediction_head"]),
    }


def prepare_kernel_momentum(momentum):
    return {
        "backbone": _prep_backbone(momentum["backbone"]),
        "projection_head": _prep_head(momentum["projection_head"]),
    }


# ----------------------------------------------------------------------------
# Parameter construction (PyTorch layout) + EMA
# ----------------------------------------------------------------------------
def init_mlp_params(key, d_in, d_hidden, d_out, scale=0.05):
    k1, k2 = jax.random.split(key)
    return {
        "w1": scale * jax.random.normal(k1, (d_hidden, d_in), jnp.float32),
        "b1": jnp.zeros((d_hidden,), jnp.float32),
        "gamma": jnp.ones((d_hidden,), jnp.float32),
        "beta": jnp.zeros((d_hidden,), jnp.float32),
        "w2": scale * jax.random.normal(k2, (d_out, d_hidden), jnp.float32),
        "b2": jnp.zeros((d_out,), jnp.float32),
    }


def init_byol_params(key, channels, num_ftrs, hidden_dim, out_dim):
    kb, kp, kq = jax.random.split(key, 3)
    params = {
        "backbone": {
            "w": 0.05 * jax.random.normal(kb, (num_ftrs, channels), jnp.float32),
            "b": jnp.zeros((num_ftrs,), jnp.float32),
        },
        "projection_head": init_mlp_params(kp, num_ftrs, hidden_dim, out_dim),
        "prediction_head": init_mlp_params(kq, out_dim, hidden_dim, out_dim),
    }
    # _init_momentum_encoder: momentum encoder = copy(backbone + projection)
    momentum = jax.tree_util.tree_map(
        lambda a: a,
        {"backbone": params["backbone"],
         "projection_head": params["projection_head"]},
    )
    return params, momentum


def _ema(momentum, online, m):
    return jax.tree_util.tree_map(lambda mo, on: m * mo + (1.0 - m) * on,
                                  momentum, online)


# ----------------------------------------------------------------------------
# BYOL forward (matches BYOL.forward, return_features=False)
# ----------------------------------------------------------------------------
@functools.partial(jax.jit, static_argnames=("m",))
def byol_forward(kparams, kmomentum, x0, x1, m=0.999):
    B = x0.shape[0]
    Cp, Fp = kparams["backbone"]["w"].shape
    Hp = kparams["projection_head"]["w1"].shape[1]
    Op = kparams["projection_head"]["w2"].shape[1]

    # Momentum update happens once per _forward pass (as in the PyTorch module);
    # pass 0 uses momentum_1, pass 1 uses momentum_2; momentum_2 is returned.
    online_enc = {"backbone": kparams["backbone"],
                  "projection_head": kparams["projection_head"]}
    mom1 = _ema(kmomentum, online_enc, m)
    mom2 = _ema(mom1, online_enc, m)

    # Global average pool over H,W in the wrapper (1x1 conv and GAP commute),
    # pad the channel axis to the lane width.  Inputs stay f32 (~1 KiB each).
    def pool_pad(x):
        pooled = jnp.mean(x, axis=(2, 3))               # (B, C)
        return _pad_to(pooled, (B, Cp)).astype(jnp.float32)

    x0p = pool_pad(x0)
    x1p = pool_pad(x1)

    def w(a):                                           # MXU operand cast
        return a.astype(jnp.bfloat16)

    def head_args(h):
        return (w(h["w1"]), h["b1"], h["gamma"], h["beta"], w(h["w2"]), h["b2"])

    args = (
        x0p, x1p,
        w(kparams["backbone"]["w"]), kparams["backbone"]["b"],
        *head_args(kparams["projection_head"]),
        *head_args(kparams["prediction_head"]),
        w(mom1["backbone"]["w"]), mom1["backbone"]["b"],
        *head_args(mom1["projection_head"]),
        w(mom2["backbone"]["w"]), mom2["backbone"]["b"],
        *head_args(mom2["projection_head"]),
    )

    flops = 2 * B * (2 * Cp * Fp + 3 * 2 * (Fp * Hp + Hp * Op))
    bytes_accessed = (sum(int(a.size) * a.dtype.itemsize for a in args)
                      + 2 * 2 * B * Op * 4)

    out_shape = (jax.ShapeDtypeStruct((2, B, Op), jnp.float32),   # p0, p1
                 jax.ShapeDtypeStruct((2, B, Op), jnp.float32))   # z1, z0

    # Single invocation (no grid): every array is a whole-block VMEM ref.
    p_stack, z_stack = pl.pallas_call(
        _byol_kernel,
        out_shape=out_shape,
        cost_estimate=pl.CostEstimate(flops=flops, transcendentals=6 * Hp,
                                      bytes_accessed=bytes_accessed),
    )(*args)

    O = kparams["prediction_head"]["b2"].shape[1]  # padded; slice real width below
    return (p_stack, z_stack), mom2


# ----------------------------------------------------------------------------
# Pure-JAX reference (mirrors the kernel's bf16-at-the-MXU math)
# ----------------------------------------------------------------------------
def _q(a):
    return a.astype(jnp.bfloat16).astype(jnp.float32)


def _ref_backbone(x, bb):
    pooled = jnp.mean(x, axis=(2, 3))
    return jnp.dot(_q(pooled), _q(bb["w"].T),
                   precision=jax.lax.Precision.HIGHEST) + bb["b"]


def _ref_mlp(x, head):
    h = jnp.dot(_q(x), _q(head["w1"].T),
                precision=jax.lax.Precision.HIGHEST) + head["b1"]
    mu = jnp.mean(h, axis=0, keepdims=True)
    var = jnp.maximum(jnp.mean(h * h, axis=0, keepdims=True) - mu * mu, 0.0)
    scale = head["gamma"] * jax.lax.rsqrt(var + BN_EPS)
    shift = head["beta"] - mu * scale
    hn = jnp.maximum(h * scale + shift, 0.0)
    return jnp.dot(_q(hn), _q(head["w2"].T),
                   precision=jax.lax.Precision.HIGHEST) + head["b2"]


def _ref_forward(params, momentum, x0, x1, m):
    online_enc = {"backbone": params["backbone"],
                  "projection_head": params["projection_head"]}
    mom1 = _ema(momentum, online_enc, m)
    mom2 = _ema(mom1, online_enc, m)

    def one_pass(xa, xb, mom):
        f_on = _ref_backbone(xa, params["backbone"])
        z_on = _ref_mlp(f_on, params["projection_head"])
        p = _ref_mlp(z_on, params["prediction_head"])
        f_mo = _ref_backbone(xb, mom["backbone"])
        z = _ref_mlp(f_mo, mom["projection_head"])
        return p, z

    p0, z1 = one_pass(x0, x1, mom1)
    p1, z0 = one_pass(x1, x0, mom2)
    return ((z0, p0), (z1, p1)), mom2


# ----------------------------------------------------------------------------
# main
# ----------------------------------------------------------------------------
if __name__ == "__main__":
    B, C, H, W = 2, 4, 16, 16
    NUM_FTRS, HIDDEN_DIM, OUT_DIM = 32, 64, 16
    M = 0.999

    key = jax.random.PRNGKey(0)
    k_params, k_x0, k_x1 = jax.random.split(key, 3)

    params, momentum = init_byol_params(k_params, C, NUM_FTRS, HIDDEN_DIM, OUT_DIM)

    # One-time conversion to persistent kernel layout (done outside the step).
    kparams = prepare_kernel_params(params)
    kmomentum = prepare_kernel_momentum(momentum)

    x0 = jax.random.normal(k_x0, (B, C, H, W), jnp.float32)
    x1 = jax.random.normal(k_x1, (B, C, H, W), jnp.float32)

    (p_stack, z_stack), new_momentum = byol_forward(kparams, kmomentum, x0, x1, m=M)
    jax.block_until_ready((p_stack, z_stack, new_momentum))

    # Slice away the 128-lane padding to the real output width.
    p0 = p_stack[0, :, :OUT_DIM]
    p1 = p_stack[1, :, :OUT_DIM]
    z1 = z_stack[0, :, :OUT_DIM]
    z0 = z_stack[1, :, :OUT_DIM]

    assert z0.shape == (B, OUT_DIM) and p0.shape == (B, OUT_DIM)
    assert z1.shape == (B, OUT_DIM) and p1.shape == (B, OUT_DIM)

    ((rz0, rp0), (rz1, rp1)), _ = _ref_forward(params, momentum, x0, x1, M)
    for got, want in ((z0, rz0), (p0, rp0), (z1, rz1), (p1, rp1)):
        assert bool(jnp.all(jnp.isfinite(got)))
        assert bool(jnp.allclose(got, want, rtol=5e-2, atol=5e-3)), float(
            jnp.max(jnp.abs(got - want)))

    print("KERNEL_OK")
</pallas_src>

<mosaic_0001>
module attributes {stable_mosaic.version = 11 : i64} {
  func.func @_byol_kernel(%arg0: memref<2x128xf32, #tpu.memory_space<vmem>>, %arg1: memref<2x128xf32, #tpu.memory_space<vmem>>, %arg2: memref<128x128xbf16, #tpu.memory_space<vmem>>, %arg3: memref<1x128xf32, #tpu.memory_space<vmem>>, %arg4: memref<128x128xbf16, #tpu.memory_space<vmem>>, %arg5: memref<1x128xf32, #tpu.memory_space<vmem>>, %arg6: memref<1x128xf32, #tpu.memory_space<vmem>>, %arg7: memref<1x128xf32, #tpu.memory_space<vmem>>, %arg8: memref<128x128xbf16, #tpu.memory_space<vmem>>, %arg9: memref<1x128xf32, #tpu.memory_space<vmem>>, %arg10: memref<128x128xbf16, #tpu.memory_space<vmem>>, %arg11: memref<1x128xf32, #tpu.memory_space<vmem>>, %arg12: memref<1x128xf32, #tpu.memory_space<vmem>>, %arg13: memref<1x128xf32, #tpu.memory_space<vmem>>, %arg14: memref<128x128xbf16, #tpu.memory_space<vmem>>, %arg15: memref<1x128xf32, #tpu.memory_space<vmem>>, %arg16: memref<128x128xbf16, #tpu.memory_space<vmem>>, %arg17: memref<1x128xf32, #tpu.memory_space<vmem>>, %arg18: memref<128x128xbf16, #tpu.memory_space<vmem>>, %arg19: memref<1x128xf32, #tpu.memory_space<vmem>>, %arg20: memref<1x128xf32, #tpu.memory_space<vmem>>, %arg21: memref<1x128xf32, #tpu.memory_space<vmem>>, %arg22: memref<128x128xbf16, #tpu.memory_space<vmem>>, %arg23: memref<1x128xf32, #tpu.memory_space<vmem>>, %arg24: memref<128x128xbf16, #tpu.memory_space<vmem>>, %arg25: memref<1x128xf32, #tpu.memory_space<vmem>>, %arg26: memref<128x128xbf16, #tpu.memory_space<vmem>>, %arg27: memref<1x128xf32, #tpu.memory_space<vmem>>, %arg28: memref<1x128xf32, #tpu.memory_space<vmem>>, %arg29: memref<1x128xf32, #tpu.memory_space<vmem>>, %arg30: memref<128x128xbf16, #tpu.memory_space<vmem>>, %arg31: memref<1x128xf32, #tpu.memory_space<vmem>>, %arg32: memref<2x2x128xf32, #tpu.memory_space<vmem>>, %arg33: memref<2x2x128xf32, #tpu.memory_space<vmem>>) attributes {dimension_semantics = [], scalar_prefetch = 0 : i64, scratch_operands = 0 : i64, tpu.core_type = #tpu.core_type<tc>} {
    %c0 = arith.constant 0 : index
    %c0_0 = arith.constant 0 : index
    %0 = vector.load %arg0[%c0, %c0_0] : memref<2x128xf32, #tpu.memory_space<vmem>>, vector<2x128xf32>
    %1 = arith.truncf %0 : vector<2x128xf32> to vector<2x128xbf16>
    %c0_1 = arith.constant 0 : index
    %c0_2 = arith.constant 0 : index
    %2 = vector.load %arg2[%c0_1, %c0_2] : memref<128x128xbf16, #tpu.memory_space<vmem>>, vector<128x128xbf16>
    %cst = arith.constant dense<0.000000e+00> : vector<2x128xf32>
    %3 = tpu.matmul %1, %2, %cst {dimension_numbers = #tpu.dot_dimension_numbers<[1], [0], [0], [1], [0, 0, 1, 1], [], []>} : vector<2x128xbf16>, vector<128x128xbf16>, vector<2x128xf32> -> vector<2x128xf32>
    %c0_3 = arith.constant 0 : index
    %c0_4 = arith.constant 0 : index
    %4 = vector.load %arg3[%c0_3, %c0_4] : memref<1x128xf32, #tpu.memory_space<vmem>>, vector<1x128xf32>
    %5 = vector.broadcast %4 : vector<1x128xf32> to vector<2x128xf32>
    %6 = arith.addf %3, %5 : vector<2x128xf32>
    %7 = arith.truncf %6 : vector<2x128xf32> to vector<2x128xbf16>
    %c0_5 = arith.constant 0 : index
    %c0_6 = arith.constant 0 : index
    %8 = vector.load %arg4[%c0_5, %c0_6] : memref<128x128xbf16, #tpu.memory_space<vmem>>, vector<128x128xbf16>
    %cst_7 = arith.constant dense<0.000000e+00> : vector<2x128xf32>
    %9 = tpu.matmul %7, %8, %cst_7 {dimension_numbers = #tpu.dot_dimension_numbers<[1], [0], [0], [1], [0, 0, 1, 1], [], []>} : vector<2x128xbf16>, vector<128x128xbf16>, vector<2x128xf32> -> vector<2x128xf32>
    %c0_8 = arith.constant 0 : index
    %c0_9 = arith.constant 0 : index
    %10 = vector.load %arg5[%c0_8, %c0_9] : memref<1x128xf32, #tpu.memory_space<vmem>>, vector<1x128xf32>
    %11 = vector.broadcast %10 : vector<1x128xf32> to vector<2x128xf32>
    %12 = arith.addf %9, %11 : vector<2x128xf32>
    %cst_10 = arith.constant dense<0.000000e+00> : vector<128xf32>
    %13 = vector.multi_reduction <add>, %12, %cst_10 [0] : vector<2x128xf32> to vector<128xf32>
    %14 = vector.shape_cast %13 : vector<128xf32> to vector<1x128xf32>
    %cst_11 = arith.constant 2.000000e+00 : f32
    %15 = vector.broadcast %cst_11 : f32 to vector<1x128xf32>
    %16 = arith.divf %14, %15 : vector<1x128xf32>
    %17 = arith.mulf %12, %12 : vector<2x128xf32>
    %cst_12 = arith.constant dense<0.000000e+00> : vector<128xf32>
    %18 = vector.multi_reduction <add>, %17, %cst_12 [0] : vector<2x128xf32> to vector<128xf32>
    %19 = vector.shape_cast %18 : vector<128xf32> to vector<1x128xf32>
    %cst_13 = arith.constant 2.000000e+00 : f32
    %20 = vector.broadcast %cst_13 : f32 to vector<1x128xf32>
    %21 = arith.divf %19, %20 : vector<1x128xf32>
    %22 = arith.mulf %16, %16 : vector<1x128xf32>
    %23 = arith.subf %21, %22 : vector<1x128xf32>
    %cst_14 = arith.constant 0.000000e+00 : f32
    %24 = vector.broadcast %cst_14 : f32 to vector<1x128xf32>
    %25 = arith.maximumf %23, %24 : vector<1x128xf32>
    %c0_15 = arith.constant 0 : index
    %c0_16 = arith.constant 0 : index
    %26 = vector.load %arg6[%c0_15, %c0_16] : memref<1x128xf32, #tpu.memory_space<vmem>>, vector<1x128xf32>
    %cst_17 = arith.constant 9.99999974E-6 : f32
    %27 = vector.broadcast %cst_17 : f32 to vector<1x128xf32>
    %28 = arith.addf %25, %27 : vector<1x128xf32>
    %29 = math.rsqrt %28 : vector<1x128xf32>
    %30 = arith.mulf %26, %29 : vector<1x128xf32>
    %c0_18 = arith.constant 0 : index
    %c0_19 = arith.constant 0 : index
    %31 = vector.load %arg7[%c0_18, %c0_19] : memref<1x128xf32, #tpu.memory_space<vmem>>, vector<1x128xf32>
    %32 = arith.mulf %16, %30 : vector<1x128xf32>
    %33 = arith.subf %31, %32 : vector<1x128xf32>
    %34 = vector.broadcast %30 : vector<1x128xf32> to vector<2x128xf32>
    %35 = arith.mulf %12, %34 : vector<2x128xf32>
    %36 = vector.broadcast %33 : vector<1x128xf32> to vector<2x128xf32>
    %37 = arith.addf %35, %36 : vector<2x128xf32>
    %cst_20 = arith.constant 0.000000e+00 : f32
    %38 = vector.broadcast %cst_20 : f32 to vector<2x128xf32>
    %39 = arith.maximumf %37, %38 : vector<2x128xf32>
    %40 = arith.truncf %39 : vector<2x128xf32> to vector<2x128xbf16>
    %c0_21 = arith.constant 0 : index
    %c0_22 = arith.constant 0 : index
    %41 = vector.load %arg8[%c0_21, %c0_22] : memref<128x128xbf16, #tpu.memory_space<vmem>>, vector<128x128xbf16>
    %cst_23 = arith.constant dense<0.000000e+00> : vector<2x128xf32>
    %42 = tpu.matmul %40, %41, %cst_23 {dimension_numbers = #tpu.dot_dimension_numbers<[1], [0], [0], [1], [0, 0, 1, 1], [], []>} : vector<2x128xbf16>, vector<128x128xbf16>, vector<2x128xf32> -> vector<2x128xf32>
    %c0_24 = arith.constant 0 : index
    %c0_25 = arith.constant 0 : index
    %43 = vector.load %arg9[%c0_24, %c0_25] : memref<1x128xf32, #tpu.memory_space<vmem>>, vector<1x128xf32>
    %44 = vector.broadcast %43 : vector<1x128xf32> to vector<2x128xf32>
    %45 = arith.addf %42, %44 : vector<2x128xf32>
    %46 = arith.truncf %45 : vector<2x128xf32> to vector<2x128xbf16>
    %c0_26 = arith.constant 0 : index
    %c0_27 = arith.constant 0 : index
    %47 = vector.load %arg10[%c0_26, %c0_27] : memref<128x128xbf16, #tpu.memory_space<vmem>>, vector<128x128xbf16>
    %cst_28 = arith.constant dense<0.000000e+00> : vector<2x128xf32>
    %48 = tpu.matmul %46, %47, %cst_28 {dimension_numbers = #tpu.dot_dimension_numbers<[1], [0], [0], [1], [0, 0, 1, 1], [], []>} : vector<2x128xbf16>, vector<128x128xbf16>, vector<2x128xf32> -> vector<2x128xf32>
    %c0_29 = arith.constant 0 : index
    %c0_30 = arith.constant 0 : index
    %49 = vector.load %arg11[%c0_29, %c0_30] : memref<1x128xf32, #tpu.memory_space<vmem>>, vector<1x128xf32>
    %50 = vector.broadcast %49 : vector<1x128xf32> to vector<2x128xf32>
    %51 = arith.addf %48, %50 : vector<2x128xf32>
    %cst_31 = arith.constant dense<0.000000e+00> : vector<128xf32>
    %52 = vector.multi_reduction <add>, %51, %cst_31 [0] : vector<2x128xf32> to vector<128xf32>
    %53 = vector.shape_cast %52 : vector<128xf32> to vector<1x128xf32>
    %cst_32 = arith.constant 2.000000e+00 : f32
    %54 = vector.broadcast %cst_32 : f32 to vector<1x128xf32>
    %55 = arith.divf %53, %54 : vector<1x128xf32>
    %56 = arith.mulf %51, %51 : vector<2x128xf32>
    %cst_33 = arith.constant dense<0.000000e+00> : vector<128xf32>
    %57 = vector.multi_reduction <add>, %56, %cst_33 [0] : vector<2x128xf32> to vector<128xf32>
    %58 = vector.shape_cast %57 : vector<128xf32> to vector<1x128xf32>
    %cst_34 = arith.constant 2.000000e+00 : f32
    %59 = vector.broadcast %cst_34 : f32 to vector<1x128xf32>
    %60 = arith.divf %58, %59 : vector<1x128xf32>
    %61 = arith.mulf %55, %55 : vector<1x128xf32>
    %62 = arith.subf %60, %61 : vector<1x128xf32>
    %cst_35 = arith.constant 0.000000e+00 : f32
    %63 = vector.broadcast %cst_35 : f32 to vector<1x128xf32>
    %64 = arith.maximumf %62, %63 : vector<1x128xf32>
    %c0_36 = arith.constant 0 : index
    %c0_37 = arith.constant 0 : index
    %65 = vector.load %arg12[%c0_36, %c0_37] : memref<1x128xf32, #tpu.memory_space<vmem>>, vector<1x128xf32>
    %cst_38 = arith.constant 9.99999974E-6 : f32
    %66 = vector.broadcast %cst_38 : f32 to vector<1x128xf32>
    %67 = arith.addf %64, %66 : vector<1x128xf32>
    %68 = math.rsqrt %67 : vector<1x128xf32>
    %69 = arith.mulf %65, %68 : vector<1x128xf32>
    %c0_39 = arith.constant 0 : index
    %c0_40 = arith.constant 0 : index
    %70 = vector.load %arg13[%c0_39, %c0_40] : memref<1x128xf32, #tpu.memory_space<vmem>>, vector<1x128xf32>
    %71 = arith.mulf %55, %69 : vector<1x128xf32>
    %72 = arith.subf %70, %71 : vector<1x128xf32>
    %73 = vector.broadcast %69 : vector<1x128xf32> to vector<2x128xf32>
    %74 = arith.mulf %51, %73 : vector<2x128xf32>
    %75 = vector.broadcast %72 : vector<1x128xf32> to vector<2x128xf32>
    %76 = arith.addf %74, %75 : vector<2x128xf32>
    %cst_41 = arith.constant 0.000000e+00 : f32
    %77 = vector.broadcast %cst_41 : f32 to vector<2x128xf32>
    %78 = arith.maximumf %76, %77 : vector<2x128xf32>
    %79 = arith.truncf %78 : vector<2x128xf32> to vector<2x128xbf16>
    %c0_42 = arith.constant 0 : index
    %c0_43 = arith.constant 0 : index
    %80 = vector.load %arg14[%c0_42, %c0_43] : memref<128x128xbf16, #tpu.memory_space<vmem>>, vector<128x128xbf16>
    %cst_44 = arith.constant dense<0.000000e+00> : vector<2x128xf32>
    %81 = tpu.matmul %79, %80, %cst_44 {dimension_numbers = #tpu.dot_dimension_numbers<[1], [0], [0], [1], [0, 0, 1, 1], [], []>} : vector<2x128xbf16>, vector<128x128xbf16>, vector<2x128xf32> -> vector<2x128xf32>
    %c0_45 = arith.constant 0 : index
    %c0_46 = arith.constant 0 : index
    %82 = vector.load %arg15[%c0_45, %c0_46] : memref<1x128xf32, #tpu.memory_space<vmem>>, vector<1x128xf32>
    %83 = vector.broadcast %82 : vector<1x128xf32> to vector<2x128xf32>
    %84 = arith.addf %81, %83 : vector<2x128xf32>
    %c0_47 = arith.constant 0 : index
    %c0_48 = arith.constant 0 : index
    %c0_49 = arith.constant 0 : index
    %85 = vector.load %arg32[%c0_47, %c0_48, %c0_49] : memref<2x2x128xf32, #tpu.memory_space<vmem>>, vector<1x2x128xf32>
    %86 = vector.shape_cast %85 : vector<1x2x128xf32> to vector<2x128xf32>
    %87 = vector.shape_cast %84 : vector<2x128xf32> to vector<1x2x128xf32>
    tpu.vector_store %arg32[%c0_47, %c0_48, %c0_49], %87 {strides = array<i32>} : memref<2x2x128xf32, #tpu.memory_space<vmem>>, vector<1x2x128xf32>,
    %c0_50 = arith.constant 0 : index
    %c0_51 = arith.constant 0 : index
    %88 = vector.load %arg1[%c0_50, %c0_51] : memref<2x128xf32, #tpu.memory_space<vmem>>, vector<2x128xf32>
    %89 = arith.truncf %88 : vector<2x128xf32> to vector<2x128xbf16>
    %c0_52 = arith.constant 0 : index
    %c0_53 = arith.constant 0 : index
    %90 = vector.load %arg16[%c0_52, %c0_53] : memref<128x128xbf16, #tpu.memory_space<vmem>>, vector<128x128xbf16>
    %cst_54 = arith.constant dense<0.000000e+00> : vector<2x128xf32>
    %91 = tpu.matmul %89, %90, %cst_54 {dimension_numbers = #tpu.dot_dimension_numbers<[1], [0], [0], [1], [0, 0, 1, 1], [], []>} : vector<2x128xbf16>, vector<128x128xbf16>, vector<2x128xf32> -> vector<2x128xf32>
    %c0_55 = arith.constant 0 : index
    %c0_56 = arith.constant 0 : index
    %92 = vector.load %arg17[%c0_55, %c0_56] : memref<1x128xf32, #tpu.memory_space<vmem>>, vector<1x128xf32>
    %93 = vector.broadcast %92 : vector<1x128xf32> to vector<2x128xf32>
    %94 = arith.addf %91, %93 : vector<2x128xf32>
    %95 = arith.truncf %94 : vector<2x128xf32> to vector<2x128xbf16>
    %c0_57 = arith.constant 0 : index
    %c0_58 = arith.constant 0 : index
    %96 = vector.load %arg18[%c0_57, %c0_58] : memref<128x128xbf16, #tpu.memory_space<vmem>>, vector<128x128xbf16>
    %cst_59 = arith.constant dense<0.000000e+00> : vector<2x128xf32>
    %97 = tpu.matmul %95, %96, %cst_59 {dimension_numbers = #tpu.dot_dimension_numbers<[1], [0], [0], [1], [0, 0, 1, 1], [], []>} : vector<2x128xbf16>, vector<128x128xbf16>, vector<2x128xf32> -> vector<2x128xf32>
    %c0_60 = arith.constant 0 : index
    %c0_61 = arith.constant 0 : index
    %98 = vector.load %arg19[%c0_60, %c0_61] : memref<1x128xf32, #tpu.memory_space<vmem>>, vector<1x128xf32>
    %99 = vector.broadcast %98 : vector<1x128xf32> to vector<2x128xf32>
    %100 = arith.addf %97, %99 : vector<2x128xf32>
    %cst_62 = arith.constant dense<0.000000e+00> : vector<128xf32>
    %101 = vector.multi_reduction <add>, %100, %cst_62 [0] : vector<2x128xf32> to vector<128xf32>
    %102 = vector.shape_cast %101 : vector<128xf32> to vector<1x128xf32>
    %cst_63 = arith.constant 2.000000e+00 : f32
    %103 = vector.broadcast %cst_63 : f32 to vector<1x128xf32>
    %104 = arith.divf %102, %103 : vector<1x128xf32>
    %105 = arith.mulf %100, %100 : vector<2x128xf32>
    %cst_64 = arith.constant dense<0.000000e+00> : vector<128xf32>
    %106 = vector.multi_reduction <add>, %105, %cst_64 [0] : vector<2x128xf32> to vector<128xf32>
    %107 = vector.shape_cast %106 : vector<128xf32> to vector<1x128xf32>
    %cst_65 = arith.constant 2.000000e+00 : f32
    %108 = vector.broadcast %cst_65 : f32 to vector<1x128xf32>
    %109 = arith.divf %107, %108 : vector<1x128xf32>
    %110 = arith.mulf %104, %104 : vector<1x128xf32>
    %111 = arith.subf %109, %110 : vector<1x128xf32>
    %cst_66 = arith.constant 0.000000e+00 : f32
    %112 = vector.broadcast %cst_66 : f32 to vector<1x128xf32>
    %113 = arith.maximumf %111, %112 : vector<1x128xf32>
    %c0_67 = arith.constant 0 : index
    %c0_68 = arith.constant 0 : index
    %114 = vector.load %arg20[%c0_67, %c0_68] : memref<1x128xf32, #tpu.memory_space<vmem>>, vector<1x128xf32>
    %cst_69 = arith.constant 9.99999974E-6 : f32
    %115 = vector.broadcast %cst_69 : f32 to vector<1x128xf32>
    %116 = arith.addf %113, %115 : vector<1x128xf32>
    %117 = math.rsqrt %116 : vector<1x128xf32>
    %118 = arith.mulf %114, %117 : vector<1x128xf32>
    %c0_70 = arith.constant 0 : index
    %c0_71 = arith.constant 0 : index
    %119 = vector.load %arg21[%c0_70, %c0_71] : memref<1x128xf32, #tpu.memory_space<vmem>>, vector<1x128xf32>
    %120 = arith.mulf %104, %118 : vector<1x128xf32>
    %121 = arith.subf %119, %120 : vector<1x128xf32>
    %122 = vector.broadcast %118 : vector<1x128xf32> to vector<2x128xf32>
    %123 = arith.mulf %100, %122 : vector<2x128xf32>
    %124 = vector.broadcast %121 : vector<1x128xf32> to vector<2x128xf32>
    %125 = arith.addf %123, %124 : vector<2x128xf32>
    %cst_72 = arith.constant 0.000000e+00 : f32
    %126 = vector.broadcast %cst_72 : f32 to vector<2x128xf32>
    %127 = arith.maximumf %125, %126 : vector<2x128xf32>
    %128 = arith.truncf %127 : vector<2x128xf32> to vector<2x128xbf16>
    %c0_73 = arith.constant 0 : index
    %c0_74 = arith.constant 0 : index
    %129 = vector.load %arg22[%c0_73, %c0_74] : memref<128x128xbf16, #tpu.memory_space<vmem>>, vector<128x128xbf16>
    %cst_75 = arith.constant dense<0.000000e+00> : vector<2x128xf32>
    %130 = tpu.matmul %128, %129, %cst_75 {dimension_numbers = #tpu.dot_dimension_numbers<[1], [0], [0], [1], [0, 0, 1, 1], [], []>} : vector<2x128xbf16>, vector<128x128xbf16>, vector<2x128xf32> -> vector<2x128xf32>
    %c0_76 = arith.constant 0 : index
    %c0_77 = arith.constant 0 : index
    %131 = vector.load %arg23[%c0_76, %c0_77] : memref<1x128xf32, #tpu.memory_space<vmem>>, vector<1x128xf32>
    %132 = vector.broadcast %131 : vector<1x128xf32> to vector<2x128xf32>
    %133 = arith.addf %130, %132 : vector<2x128xf32>
    %c0_78 = arith.constant 0 : index
    %c0_79 = arith.constant 0 : index
    %c0_80 = arith.constant 0 : index
    %134 = vector.load %arg33[%c0_78, %c0_79, %c0_80] : memref<2x2x128xf32, #tpu.memory_space<vmem>>, vector<1x2x128xf32>
    %135 = vector.shape_cast %134 : vector<1x2x128xf32> to vector<2x128xf32>
    %136 = vector.shape_cast %133 : vector<2x128xf32> to vector<1x2x128xf32>
    tpu.vector_store %arg33[%c0_78, %c0_79, %c0_80], %136 {strides = array<i32>} : memref<2x2x128xf32, #tpu.memory_space<vmem>>, vector<1x2x128xf32>,
    %c0_81 = arith.constant 0 : index
    %c0_82 = arith.constant 0 : index
    %137 = vector.load %arg1[%c0_81, %c0_82] : memref<2x128xf32, #tpu.memory_space<vmem>>, vector<2x128xf32>
    %138 = arith.truncf %137 : vector<2x128xf32> to vector<2x128xbf16>
    %c0_83 = arith.constant 0 : index
    %c0_84 = arith.constant 0 : index
    %139 = vector.load %arg2[%c0_83, %c0_84] : memref<128x128xbf16, #tpu.memory_space<vmem>>, vector<128x128xbf16>
    %cst_85 = arith.constant dense<0.000000e+00> : vector<2x128xf32>
    %140 = tpu.matmul %138, %139, %cst_85 {dimension_numbers = #tpu.dot_dimension_numbers<[1], [0], [0], [1], [0, 0, 1, 1], [], []>} : vector<2x128xbf16>, vector<128x128xbf16>, vector<2x128xf32> -> vector<2x128xf32>
    %c0_86 = arith.constant 0 : index
    %c0_87 = arith.constant 0 : index
    %141 = vector.load %arg3[%c0_86, %c0_87] : memref<1x128xf32, #tpu.memory_space<vmem>>, vector<1x128xf32>
    %142 = vector.broadcast %141 : vector<1x128xf32> to vector<2x128xf32>
    %143 = arith.addf %140, %142 : vector<2x128xf32>
    %144 = arith.truncf %143 : vector<2x128xf32> to vector<2x128xbf16>
    %c0_88 = arith.constant 0 : index
    %c0_89 = arith.constant 0 : index
    %145 = vector.load %arg4[%c0_88, %c0_89] : memref<128x128xbf16, #tpu.memory_space<vmem>>, vector<128x128xbf16>
    %cst_90 = arith.constant dense<0.000000e+00> : vector<2x128xf32>
    %146 = tpu.matmul %144, %145, %cst_90 {dimension_numbers = #tpu.dot_dimension_numbers<[1], [0], [0], [1], [0, 0, 1, 1], [], []>} : vector<2x128xbf16>, vector<128x128xbf16>, vector<2x128xf32> -> vector<2x128xf32>
    %c0_91 = arith.constant 0 : index
    %c0_92 = arith.constant 0 : index
    %147 = vector.load %arg5[%c0_91, %c0_92] : memref<1x128xf32, #tpu.memory_space<vmem>>, vector<1x128xf32>
    %148 = vector.broadcast %147 : vector<1x128xf32> to vector<2x128xf32>
    %149 = arith.addf %146, %148 : vector<2x128xf32>
    %cst_93 = arith.constant dense<0.000000e+00> : vector<128xf32>
    %150 = vector.multi_reduction <add>, %149, %cst_93 [0] : vector<2x128xf32> to vector<128xf32>
    %151 = vector.shape_cast %150 : vector<128xf32> to vector<1x128xf32>
    %cst_94 = arith.constant 2.000000e+00 : f32
    %152 = vector.broadcast %cst_94 : f32 to vector<1x128xf32>
    %153 = arith.divf %151, %152 : vector<1x128xf32>
    %154 = arith.mulf %149, %149 : vector<2x128xf32>
    %cst_95 = arith.constant dense<0.000000e+00> : vector<128xf32>
    %155 = vector.multi_reduction <add>, %154, %cst_95 [0] : vector<2x128xf32> to vector<128xf32>
    %156 = vector.shape_cast %155 : vector<128xf32> to vector<1x128xf32>
    %cst_96 = arith.constant 2.000000e+00 : f32
    %157 = vector.broadcast %cst_96 : f32 to vector<1x128xf32>
    %158 = arith.divf %156, %157 : vector<1x128xf32>
    %159 = arith.mulf %153, %153 : vector<1x128xf32>
    %160 = arith.subf %158, %159 : vector<1x128xf32>
    %cst_97 = arith.constant 0.000000e+00 : f32
    %161 = vector.broadcast %cst_97 : f32 to vector<1x128xf32>
    %162 = arith.maximumf %160, %161 : vector<1x128xf32>
    %c0_98 = arith.constant 0 : index
    %c0_99 = arith.constant 0 : index
    %163 = vector.load %arg6[%c0_98, %c0_99] : memref<1x128xf32, #tpu.memory_space<vmem>>, vector<1x128xf32>
    %cst_100 = arith.constant 9.99999974E-6 : f32
    %164 = vector.broadcast %cst_100 : f32 to vector<1x128xf32>
    %165 = arith.addf %162, %164 : vector<1x128xf32>
    %166 = math.rsqrt %165 : vector<1x128xf32>
    %167 = arith.mulf %163, %166 : vector<1x128xf32>
    %c0_101 = arith.constant 0 : index
    %c0_102 = arith.constant 0 : index
    %168 = vector.load %arg7[%c0_101, %c0_102] : memref<1x128xf32, #tpu.memory_space<vmem>>, vector<1x128xf32>
    %169 = arith.mulf %153, %167 : vector<1x128xf32>
    %170 = arith.subf %168, %169 : vector<1x128xf32>
    %171 = vector.broadcast %167 : vector<1x128xf32> to vector<2x128xf32>
    %172 = arith.mulf %149, %171 : vector<2x128xf32>
    %173 = vector.broadcast %170 : vector<1x128xf32> to vector<2x128xf32>
    %174 = arith.addf %172, %173 : vector<2x128xf32>
    %cst_103 = arith.constant 0.000000e+00 : f32
    %175 = vector.broadcast %cst_103 : f32 to vector<2x128xf32>
    %176 = arith.maximumf %174, %175 : vector<2x128xf32>
    %177 = arith.truncf %176 : vector<2x128xf32> to vector<2x128xbf16>
    %c0_104 = arith.constant 0 : index
    %c0_105 = arith.constant 0 : index
    %178 = vector.load %arg8[%c0_104, %c0_105] : memref<128x128xbf16, #tpu.memory_space<vmem>>, vector<128x128xbf16>
    %cst_106 = arith.constant dense<0.000000e+00> : vector<2x128xf32>
    %179 = tpu.matmul %177, %178, %cst_106 {dimension_numbers = #tpu.dot_dimension_numbers<[1], [0], [0], [1], [0, 0, 1, 1], [], []>} : vector<2x128xbf16>, vector<128x128xbf16>, vector<2x128xf32> -> vector<2x128xf32>
    %c0_107 = arith.constant 0 : index
    %c0_108 = arith.constant 0 : index
    %180 = vector.load %arg9[%c0_107, %c0_108] : memref<1x128xf32, #tpu.memory_space<vmem>>, vector<1x128xf32>
    %181 = vector.broadcast %180 : vector<1x128xf32> to vector<2x128xf32>
    %182 = arith.addf %179, %181 : vector<2x128xf32>
    %183 = arith.truncf %182 : vector<2x128xf32> to vector<2x128xbf16>
    %c0_109 = arith.constant 0 : index
    %c0_110 = arith.constant 0 : index
    %184 = vector.load %arg10[%c0_109, %c0_110] : memref<128x128xbf16, #tpu.memory_space<vmem>>, vector<128x128xbf16>
    %cst_111 = arith.constant dense<0.000000e+00> : vector<2x128xf32>
    %185 = tpu.matmul %183, %184, %cst_111 {dimension_numbers = #tpu.dot_dimension_numbers<[1], [0], [0], [1], [0, 0, 1, 1], [], []>} : vector<2x128xbf16>, vector<128x128xbf16>, vector<2x128xf32> -> vector<2x128xf32>
    %c0_112 = arith.constant 0 : index
    %c0_113 = arith.constant 0 : index
    %186 = vector.load %arg11[%c0_112, %c0_113] : memref<1x128xf32, #tpu.memory_space<vmem>>, vector<1x128xf32>
    %187 = vector.broadcast %186 : vector<1x128xf32> to vector<2x128xf32>
    %188 = arith.addf %185, %187 : vector<2x128xf32>
    %cst_114 = arith.constant dense<0.000000e+00> : vector<128xf32>
    %189 = vector.multi_reduction <add>, %188, %cst_114 [0] : vector<2x128xf32> to vector<128xf32>
    %190 = vector.shape_cast %189 : vector<128xf32> to vector<1x128xf32>
    %cst_115 = arith.constant 2.000000e+00 : f32
    %191 = vector.broadcast %cst_115 : f32 to vector<1x128xf32>
    %192 = arith.divf %190, %191 : vector<1x128xf32>
    %193 = arith.mulf %188, %188 : vector<2x128xf32>
    %cst_116 = arith.constant dense<0.000000e+00> : vector<128xf32>
    %194 = vector.multi_reduction <add>, %193, %cst_116 [0] : vector<2x128xf32> to vector<128xf32>
    %195 = vector.shape_cast %194 : vector<128xf32> to vector<1x128xf32>
    %cst_117 = arith.constant 2.000000e+00 : f32
    %196 = vector.broadcast %cst_117 : f32 to vector<1x128xf32>
    %197 = arith.divf %195, %196 : vector<1x128xf32>
    %198 = arith.mulf %192, %192 : vector<1x128xf32>
    %199 = arith.subf %197, %198 : vector<1x128xf32>
    %cst_118 = arith.constant 0.000000e+00 : f32
    %200 = vector.broadcast %cst_118 : f32 to vector<1x128xf32>
    %201 = arith.maximumf %199, %200 : vector<1x128xf32>
    %c0_119 = arith.constant 0 : index
    %c0_120 = arith.constant 0 : index
    %202 = vector.load %arg12[%c0_119, %c0_120] : memref<1x128xf32, #tpu.memory_space<vmem>>, vector<1x128xf32>
    %cst_121 = arith.constant 9.99999974E-6 : f32
    %203 = vector.broadcast %cst_121 : f32 to vector<1x128xf32>
    %204 = arith.addf %201, %203 : vector<1x128xf32>
    %205 = math.rsqrt %204 : vector<1x128xf32>
    %206 = arith.mulf %202, %205 : vector<1x128xf32>
    %c0_122 = arith.constant 0 : index
    %c0_123 = arith.constant 0 : index
    %207 = vector.load %arg13[%c0_122, %c0_123] : memref<1x128xf32, #tpu.memory_space<vmem>>, vector<1x128xf32>
    %208 = arith.mulf %192, %206 : vector<1x128xf32>
    %209 = arith.subf %207, %208 : vector<1x128xf32>
    %210 = vector.broadcast %206 : vector<1x128xf32> to vector<2x128xf32>
    %211 = arith.mulf %188, %210 : vector<2x128xf32>
    %212 = vector.broadcast %209 : vector<1x128xf32> to vector<2x128xf32>
    %213 = arith.addf %211, %212 : vector<2x128xf32>
    %cst_124 = arith.constant 0.000000e+00 : f32
    %214 = vector.broadcast %cst_124 : f32 to vector<2x128xf32>
    %215 = arith.maximumf %213, %214 : vector<2x128xf32>
    %216 = arith.truncf %215 : vector<2x128xf32> to vector<2x128xbf16>
    %c0_125 = arith.constant 0 : index
    %c0_126 = arith.constant 0 : index
    %217 = vector.load %arg14[%c0_125, %c0_126] : memref<128x128xbf16, #tpu.memory_space<vmem>>, vector<128x128xbf16>
    %cst_127 = arith.constant dense<0.000000e+00> : vector<2x128xf32>
    %218 = tpu.matmul %216, %217, %cst_127 {dimension_numbers = #tpu.dot_dimension_numbers<[1], [0], [0], [1], [0, 0, 1, 1], [], []>} : vector<2x128xbf16>, vector<128x128xbf16>, vector<2x128xf32> -> vector<2x128xf32>
    %c0_128 = arith.constant 0 : index
    %c0_129 = arith.constant 0 : index
    %219 = vector.load %arg15[%c0_128, %c0_129] : memref<1x128xf32, #tpu.memory_space<vmem>>, vector<1x128xf32>
    %220 = vector.broadcast %219 : vector<1x128xf32> to vector<2x128xf32>
    %221 = arith.addf %218, %220 : vector<2x128xf32>
    %c1 = arith.constant 1 : index
    %c0_130 = arith.constant 0 : index
    %c0_131 = arith.constant 0 : index
    %222 = vector.load %arg32[%c1, %c0_130, %c0_131] : memref<2x2x128xf32, #tpu.memory_space<vmem>>, vector<1x2x128xf32>
    %223 = vector.shape_cast %222 : vector<1x2x128xf32> to vector<2x128xf32>
    %224 = vector.shape_cast %221 : vector<2x128xf32> to vector<1x2x128xf32>
    tpu.vector_store %arg32[%c1, %c0_130, %c0_131], %224 {strides = array<i32>} : memref<2x2x128xf32, #tpu.memory_space<vmem>>, vector<1x2x128xf32>,
    %c0_132 = arith.constant 0 : index
    %c0_133 = arith.constant 0 : index
    %225 = vector.load %arg0[%c0_132, %c0_133] : memref<2x128xf32, #tpu.memory_space<vmem>>, vector<2x128xf32>
    %226 = arith.truncf %225 : vector<2x128xf32> to vector<2x128xbf16>
    %c0_134 = arith.constant 0 : index
    %c0_135 = arith.constant 0 : index
    %227 = vector.load %arg24[%c0_134, %c0_135] : memref<128x128xbf16, #tpu.memory_space<vmem>>, vector<128x128xbf16>
    %cst_136 = arith.constant dense<0.000000e+00> : vector<2x128xf32>
    %228 = tpu.matmul %226, %227, %cst_136 {dimension_numbers = #tpu.dot_dimension_numbers<[1], [0], [0], [1], [0, 0, 1, 1], [], []>} : vector<2x128xbf16>, vector<128x128xbf16>, vector<2x128xf32> -> vector<2x128xf32>
    %c0_137 = arith.constant 0 : index
    %c0_138 = arith.constant 0 : index
    %229 = vector.load %arg25[%c0_137, %c0_138] : memref<1x128xf32, #tpu.memory_space<vmem>>, vector<1x128xf32>
    %230 = vector.broadcast %229 : vector<1x128xf32> to vector<2x128xf32>
    %231 = arith.addf %228, %230 : vector<2x128xf32>
    %232 = arith.truncf %231 : vector<2x128xf32> to vector<2x128xbf16>
    %c0_139 = arith.constant 0 : index
    %c0_140 = arith.constant 0 : index
    %233 = vector.load %arg26[%c0_139, %c0_140] : memref<128x128xbf16, #tpu.memory_space<vmem>>, vector<128x128xbf16>
    %cst_141 = arith.constant dense<0.000000e+00> : vector<2x128xf32>
    %234 = tpu.matmul %232, %233, %cst_141 {dimension_numbers = #tpu.dot_dimension_numbers<[1], [0], [0], [1], [0, 0, 1, 1], [], []>} : vector<2x128xbf16>, vector<128x128xbf16>, vector<2x128xf32> -> vector<2x128xf32>
    %c0_142 = arith.constant 0 : index
    %c0_143 = arith.constant 0 : index
    %235 = vector.load %arg27[%c0_142, %c0_143] : memref<1x128xf32, #tpu.memory_space<vmem>>, vector<1x128xf32>
    %236 = vector.broadcast %235 : vector<1x128xf32> to vector<2x128xf32>
    %237 = arith.addf %234, %236 : vector<2x128xf32>
    %cst_144 = arith.constant dense<0.000000e+00> : vector<128xf32>
    %238 = vector.multi_reduction <add>, %237, %cst_144 [0] : vector<2x128xf32> to vector<128xf32>
    %239 = vector.shape_cast %238 : vector<128xf32> to vector<1x128xf32>
    %cst_145 = arith.constant 2.000000e+00 : f32
    %240 = vector.broadcast %cst_145 : f32 to vector<1x128xf32>
    %241 = arith.divf %239, %240 : vector<1x128xf32>
    %242 = arith.mulf %237, %237 : vector<2x128xf32>
    %cst_146 = arith.constant dense<0.000000e+00> : vector<128xf32>
    %243 = vector.multi_reduction <add>, %242, %cst_146 [0] : vector<2x128xf32> to vector<128xf32>
    %244 = vector.shape_cast %243 : vector<128xf32> to vector<1x128xf32>
    %cst_147 = arith.constant 2.000000e+00 : f32
    %245 = vector.broadcast %cst_147 : f32 to vector<1x128xf32>
    %246 = arith.divf %244, %245 : vector<1x128xf32>
    %247 = arith.mulf %241, %241 : vector<1x128xf32>
    %248 = arith.subf %246, %247 : vector<1x128xf32>
    %cst_148 = arith.constant 0.000000e+00 : f32
    %249 = vector.broadcast %cst_148 : f32 to vector<1x128xf32>
    %250 = arith.maximumf %248, %249 : vector<1x128xf32>
    %c0_149 = arith.constant 0 : index
    %c0_150 = arith.constant 0 : index
    %251 = vector.load %arg28[%c0_149, %c0_150] : memref<1x128xf32, #tpu.memory_space<vmem>>, vector<1x128xf32>
    %cst_151 = arith.constant 9.99999974E-6 : f32
    %252 = vector.broadcast %cst_151 : f32 to vector<1x128xf32>
    %253 = arith.addf %250, %252 : vector<1x128xf32>
    %254 = math.rsqrt %253 : vector<1x128xf32>
    %255 = arith.mulf %251, %254 : vector<1x128xf32>
    %c0_152 = arith.constant 0 : index
    %c0_153 = arith.constant 0 : index
    %256 = vector.load %arg29[%c0_152, %c0_153] : memref<1x128xf32, #tpu.memory_space<vmem>>, vector<1x128xf32>
    %257 = arith.mulf %241, %255 : vector<1x128xf32>
    %258 = arith.subf %256, %257 : vector<1x128xf32>
    %259 = vector.broadcast %255 : vector<1x128xf32> to vector<2x128xf32>
    %260 = arith.mulf %237, %259 : vector<2x128xf32>
    %261 = vector.broadcast %258 : vector<1x128xf32> to vector<2x128xf32>
    %262 = arith.addf %260, %261 : vector<2x128xf32>
    %cst_154 = arith.constant 0.000000e+00 : f32
    %263 = vector.broadcast %cst_154 : f32 to vector<2x128xf32>
    %264 = arith.maximumf %262, %263 : vector<2x128xf32>
    %265 = arith.truncf %264 : vector<2x128xf32> to vector<2x128xbf16>
    %c0_155 = arith.constant 0 : index
    %c0_156 = arith.constant 0 : index
    %266 = vector.load %arg30[%c0_155, %c0_156] : memref<128x128xbf16, #tpu.memory_space<vmem>>, vector<128x128xbf16>
    %cst_157 = arith.constant dense<0.000000e+00> : vector<2x128xf32>
    %267 = tpu.matmul %265, %266, %cst_157 {dimension_numbers = #tpu.dot_dimension_numbers<[1], [0], [0], [1], [0, 0, 1, 1], [], []>} : vector<2x128xbf16>, vector<128x128xbf16>, vector<2x128xf32> -> vector<2x128xf32>
    %c0_158 = arith.constant 0 : index
    %c0_159 = arith.constant 0 : index
    %268 = vector.load %arg31[%c0_158, %c0_159] : memref<1x128xf32, #tpu.memory_space<vmem>>, vector<1x128xf32>
    %269 = vector.broadcast %268 : vector<1x128xf32> to vector<2x128xf32>
    %270 = arith.addf %267, %269 : vector<2x128xf32>
    %c1_160 = arith.constant 1 : index
    %c0_161 = arith.constant 0 : index
    %c0_162 = arith.constant 0 : index
    %271 = vector.load %arg33[%c1_160, %c0_161, %c0_162] : memref<2x2x128xf32, #tpu.memory_space<vmem>>, vector<1x2x128xf32>
    %272 = vector.shape_cast %271 : vector<1x2x128xf32> to vector<2x128xf32>
    %273 = vector.shape_cast %270 : vector<2x128xf32> to vector<1x2x128xf32>
    tpu.vector_store %arg33[%c1_160, %c0_161, %c0_162], %273 {strides = array<i32>} : memref<2x2x128xf32, #tpu.memory_space<vmem>>, vector<1x2x128xf32>,
    return
  }
}

</mosaic_0001>

<llo_original>
// kernel: byol_forward.1
$region0: #{byol_forward.1}
  #allocation0 [shape = 'u32[]', space=smem, size = 0x4, offset = 0x4, fixed_abs, tag = 'smem constant byte address 0x4 - core index']
  #allocation1 [shape = 'u32[144,128]{1,0:T(1,128)}', space=vmem, size = 0x12000, scoped, tag = 'internal scratch']
  %s0 = inlined_call_operand.smem [shape: u32[34], index: -1, kind: input, shape index: {}]
  %s1 = sld [smem:[%s0]]
  %s2 = scalar_lea.smem %s0, 1
  %s3 = sld [smem:[%s2]]
  %s4 = scalar_lea.smem %s0, 2
  %s5 = sld [smem:[%s4]]
  %s6 = scalar_lea.smem %s0, 3
  %s7 = sld [smem:[%s6]]
  %s8 = scalar_lea.smem %s0, 4
  %s9 = sld [smem:[%s8]]
  %s10 = scalar_lea.smem %s0, 5
  %s11 = sld [smem:[%s10]]
  %s12 = scalar_lea.smem %s0, 6
  %s13 = sld [smem:[%s12]]
  %s14 = scalar_lea.smem %s0, 7
  %s15 = sld [smem:[%s14]]
  %s16 = scalar_lea.smem %s0, 8
  %s17 = sld [smem:[%s16]]
  %s18 = scalar_lea.smem %s0, 9
  %s19 = sld [smem:[%s18]]
  %s20 = scalar_lea.smem %s0, 10
  %s21 = sld [smem:[%s20]]
  %s22 = scalar_lea.smem %s0, 11
  %s23 = sld [smem:[%s22]]
  %s24 = scalar_lea.smem %s0, 12
  %s25 = sld [smem:[%s24]]
  %s26 = scalar_lea.smem %s0, 13
  %s27 = sld [smem:[%s26]]
  %s28 = scalar_lea.smem %s0, 14
  %s29 = sld [smem:[%s28]]
  %s30 = scalar_lea.smem %s0, 15
  %s31 = sld [smem:[%s30]]
  %s32 = scalar_lea.smem %s0, 16
  %s33 = sld [smem:[%s32]]
  %s34 = scalar_lea.smem %s0, 17
  %s35 = sld [smem:[%s34]]
  %s36 = scalar_lea.smem %s0, 18
  %s37 = sld [smem:[%s36]]
  %s38 = scalar_lea.smem %s0, 19
  %s39 = sld [smem:[%s38]]
  %s40 = scalar_lea.smem %s0, 20
  %s41 = sld [smem:[%s40]]
  %s42 = scalar_lea.smem %s0, 21
  %s43 = sld [smem:[%s42]]
  %s44 = scalar_lea.smem %s0, 22
  %s45 = sld [smem:[%s44]]
  %s46 = scalar_lea.smem %s0, 23
  %s47 = sld [smem:[%s46]]
  %s48 = scalar_lea.smem %s0, 24
  %s49 = sld [smem:[%s48]]
  %s50 = scalar_lea.smem %s0, 25
  %s51 = sld [smem:[%s50]]
  %s52 = scalar_lea.smem %s0, 26
  %s53 = sld [smem:[%s52]]
  %s54 = scalar_lea.smem %s0, 27
  %s55 = sld [smem:[%s54]]
  %s56 = scalar_lea.smem %s0, 28
  %s57 = sld [smem:[%s56]]
  %s58 = scalar_lea.smem %s0, 29
  %s59 = sld [smem:[%s58]]
  %s60 = scalar_lea.smem %s0, 30
  %s61 = sld [smem:[%s60]]
  %s62 = scalar_lea.smem %s0, 31
  %s63 = sld [smem:[%s62]]
  %s64 = scalar_lea.smem %s0, 32
  %s65 = sld [smem:[%s64]]
  %s66 = scalar_lea.smem %s0, 33
  %s67 = sld [smem:[%s66]]
  %68 = xla_tuple %s65, %s67
  %s69 = sld [smem:[#allocation0]]
  $region146: #{byol_forward.1} parent=0
    _
  %s71 = ssub.s32 1, %s69
  %s72 = scalar_select 0, %s71, %s69
  $region1: #{byol_forward.1} parent=0
    #allocation2 [shape = 'u8[2048]{0}', space=vmem, size = 0x800, scoped, tag = 'output window, operand 0, single buffered']
    #allocation3 [shape = 's32[1]{0}', space=sflag, size = 0x4, scoped, tag = 'scoped memory for byol_forward.1']
    #allocation4 [shape = 'u8[2048]{0}', space=vmem, size = 0x800, scoped, tag = 'output window, operand 1, single buffered']
    #allocation5 [shape = 's32[1]{0}', space=sflag, size = 0x4, scoped, tag = 'scoped memory for byol_forward.1']
    %73 = vsyncpa [#allocation3], 0
    %74 = vsyncpa [#allocation5], 0
    // Predicated region
    $region2: #{byol_forward.1} parent=1 // pred_check
      _
    $region3: #{byol_forward.1} parent=1 // pred_check_branch
      %76 = sbr.rel (0) target = $region5
    $region4: #{byol_forward.1} parent=1 // pred_region
      _
    $region5: #{byol_forward.1} parent=1 // pred_fallthru
      _
    // Predicated region
    $region6: #{byol_forward.1} parent=1 // pred_check
      _
    $region7: #{byol_forward.1} parent=1 // pred_check_branch
      %78 = sbr.rel (0) target = $region9
    $region8: #{byol_forward.1} parent=1 // pred_region
      _
    $region9: #{byol_forward.1} parent=1 // pred_fallthru
      _
    // Predicated region
    $region10: #{byol_forward.1} parent=1 // pred_check
      _
    $region11: #{byol_forward.1} parent=1 // pred_check_branch
      %80 = sbr.rel (0) target = $region13
    $region12: #{byol_forward.1} parent=1 // pred_region
      _
    $region13: #{byol_forward.1} parent=1 // pred_fallthru
      _
    // Predicated region
    $region14: #{byol_forward.1} parent=1 // pred_check
      _
    $region15: #{byol_forward.1} parent=1 // pred_check_branch
      %82 = sbr.rel (0) target = $region17
    $region16: #{byol_forward.1} parent=1 // pred_region
      _
    $region17: #{byol_forward.1} parent=1 // pred_fallthru
      _
    // Predicated region
    $region18: #{byol_forward.1} parent=1 // pred_check
      _
    $region19: #{byol_forward.1} parent=1 // pred_check_branch
      %84 = sbr.rel (0) target = $region21
    $region20: #{byol_forward.1} parent=1 // pred_region
      _
    $region21: #{byol_forward.1} parent=1 // pred_fallthru
      _
    // Predicated region
    $region22: #{byol_forward.1} parent=1 // pred_check
      _
    $region23: #{byol_forward.1} parent=1 // pred_check_branch
      %86 = sbr.rel (0) target = $region25
    $region24: #{byol_forward.1} parent=1 // pred_region
      _
    $region25: #{byol_forward.1} parent=1 // pred_fallthru
      _
    // Predicated region
    $region26: #{byol_forward.1} parent=1 // pred_check
      _
    $region27: #{byol_forward.1} parent=1 // pred_check_branch
      %88 = sbr.rel (0) target = $region29
    $region28: #{byol_forward.1} parent=1 // pred_region
      _
    $region29: #{byol_forward.1} parent=1 // pred_fallthru
      _
    // Predicated region
    $region30: #{byol_forward.1} parent=1 // pred_check
      _
    $region31: #{byol_forward.1} parent=1 // pred_check_branch
      %90 = sbr.rel (0) target = $region33
    $region32: #{byol_forward.1} parent=1 // pred_region
      _
    $region33: #{byol_forward.1} parent=1 // pred_fallthru
      _
    // Predicated region
    $region34: #{byol_forward.1} parent=1 // pred_check
      _
    $region35: #{byol_forward.1} parent=1 // pred_check_branch
      %92 = sbr.rel (0) target = $region37
    $region36: #{byol_forward.1} parent=1 // pred_region
      _
    $region37: #{byol_forward.1} parent=1 // pred_fallthru
      _
    // Predicated region
    $region38: #{byol_forward.1} parent=1 // pred_check
      _
    $region39: #{byol_forward.1} parent=1 // pred_check_branch
      %94 = sbr.rel (0) target = $region41
    $region40: #{byol_forward.1} parent=1 // pred_region
      _
    $region41: #{byol_forward.1} parent=1 // pred_fallthru
      _
    // Predicated region
    $region42: #{byol_forward.1} parent=1 // pred_check
      _
    $region43: #{byol_forward.1} parent=1 // pred_check_branch
      %96 = sbr.rel (0) target = $region45
    $region44: #{byol_forward.1} parent=1 // pred_region
      _
    $region45: #{byol_forward.1} parent=1 // pred_fallthru
      _
    // Predicated region
    $region46: #{byol_forward.1} parent=1 // pred_check
      _
    $region47: #{byol_forward.1} parent=1 // pred_check_branch
      %98 = sbr.rel (0) target = $region49
    $region48: #{byol_forward.1} parent=1 // pred_region
      _
    $region49: #{byol_forward.1} parent=1 // pred_fallthru
      _
    // Predicated region
    $region50: #{byol_forward.1} parent=1 // pred_check
      _
    $region51: #{byol_forward.1} parent=1 // pred_check_branch
      %100 = sbr.rel (0) target = $region53
    $region52: #{byol_forward.1} parent=1 // pred_region
      _
    $region53: #{byol_forward.1} parent=1 // pred_fallthru
      _
    // Predicated region
    $region54: #{byol_forward.1} parent=1 // pred_check
      _
    $region55: #{byol_forward.1} parent=1 // pred_check_branch
      %102 = sbr.rel (0) target = $region57
    $region56: #{byol_forward.1} parent=1 // pred_region
      _
    $region57: #{byol_forward.1} parent=1 // pred_fallthru
      _
    // Predicated region
    $region58: #{byol_forward.1} parent=1 // pred_check
      _
    $region59: #{byol_forward.1} parent=1 // pred_check_branch
      %104 = sbr.rel (0) target = $region61
    $region60: #{byol_forward.1} parent=1 // pred_region
      _
    $region61: #{byol_forward.1} parent=1 // pred_fallthru
      _
    // Predicated region
    $region62: #{byol_forward.1} parent=1 // pred_check
      _
    $region63: #{byol_forward.1} parent=1 // pred_check_branch
      %106 = sbr.rel (0) target = $region65
    $region64: #{byol_forward.1} parent=1 // pred_region
      _
    $region65: #{byol_forward.1} parent=1 // pred_fallthru
      _
    // Predicated region
    $region66: #{byol_forward.1} parent=1 // pred_check
      _
    $region67: #{byol_forward.1} parent=1 // pred_check_branch
      %108 = sbr.rel (0) target = $region69
    $region68: #{byol_forward.1} parent=1 // pred_region
      _
    $region69: #{byol_forward.1} parent=1 // pred_fallthru
      _
    // Predicated region
    $region70: #{byol_forward.1} parent=1 // pred_check
      _
    $region71: #{byol_forward.1} parent=1 // pred_check_branch
      %110 = sbr.rel (0) target = $region73
    $region72: #{byol_forward.1} parent=1 // pred_region
      _
    $region73: #{byol_forward.1} parent=1 // pred_fallthru
      _
    // Predicated region
    $region74: #{byol_forward.1} parent=1 // pred_check
      _
    $region75: #{byol_forward.1} parent=1 // pred_check_branch
      %112 = sbr.rel (0) target = $region77
    $region76: #{byol_forward.1} parent=1 // pred_region
      _
    $region77: #{byol_forward.1} parent=1 // pred_fallthru
      _
    // Predicated region
    $region78: #{byol_forward.1} parent=1 // pred_check
      _
    $region79: #{byol_forward.1} parent=1 // pred_check_branch
      %114 = sbr.rel (0) target = $region81
    $region80: #{byol_forward.1} parent=1 // pred_region
      _
    $region81: #{byol_forward.1} parent=1 // pred_fallthru
      _
    // Predicated region
    $region82: #{byol_forward.1} parent=1 // pred_check
      _
    $region83: #{byol_forward.1} parent=1 // pred_check_branch
      %116 = sbr.rel (0) target = $region85
    $region84: #{byol_forward.1} parent=1 // pred_region
      _
    $region85: #{byol_forward.1} parent=1 // pred_fallthru
      _
    // Predicated region
    $region86: #{byol_forward.1} parent=1 // pred_check
      _
    $region87: #{byol_forward.1} parent=1 // pred_check_branch
      %118 = sbr.rel (0) target = $region89
    $region88: #{byol_forward.1} parent=1 // pred_region
      _
    $region89: #{byol_forward.1} parent=1 // pred_fallthru
      _
    // Predicated region
    $region90: #{byol_forward.1} parent=1 // pred_check
      _
    $region91: #{byol_forward.1} parent=1 // pred_check_branch
      %120 = sbr.rel (0) target = $region93
    $region92: #{byol_forward.1} parent=1 // pred_region
      _
    $region93: #{byol_forward.1} parent=1 // pred_fallthru
      _
    // Predicated region
    $region94: #{byol_forward.1} parent=1 // pred_check
      _
    $region95: #{byol_forward.1} parent=1 // pred_check_branch
      %122 = sbr.rel (0) target = $region97
    $region96: #{byol_forward.1} parent=1 // pred_region
      _
    $region97: #{byol_forward.1} parent=1 // pred_fallthru
      _
    // Predicated region
    $region98: #{byol_forward.1} parent=1 // pred_check
      _
    $region99: #{byol_forward.1} parent=1 // pred_check_branch
      %124 = sbr.rel (0) target = $region101
    $region100: #{byol_forward.1} parent=1 // pred_region
      _
    $region101: #{byol_forward.1} parent=1 // pred_fallthru
      _
    // Predicated region
    $region102: #{byol_forward.1} parent=1 // pred_check
      _
    $region103: #{byol_forward.1} parent=1 // pred_check_branch
      %126 = sbr.rel (0) target = $region105
    $region104: #{byol_forward.1} parent=1 // pred_region
      _
    $region105: #{byol_forward.1} parent=1 // pred_fallthru
      _
    // Predicated region
    $region106: #{byol_forward.1} parent=1 // pred_check
      _
    $region107: #{byol_forward.1} parent=1 // pred_check_branch
      %128 = sbr.rel (0) target = $region109
    $region108: #{byol_forward.1} parent=1 // pred_region
      _
    $region109: #{byol_forward.1} parent=1 // pred_fallthru
      _
    // Predicated region
    $region110: #{byol_forward.1} parent=1 // pred_check
      _
    $region111: #{byol_forward.1} parent=1 // pred_check_branch
      %130 = sbr.rel (0) target = $region113
    $region112: #{byol_forward.1} parent=1 // pred_region
      _
    $region113: #{byol_forward.1} parent=1 // pred_fallthru
      _
    // Predicated region
    $region114: #{byol_forward.1} parent=1 // pred_check
      _
    $region115: #{byol_forward.1} parent=1 // pred_check_branch
      %132 = sbr.rel (0) target = $region117
    $region116: #{byol_forward.1} parent=1 // pred_region
      _
    $region117: #{byol_forward.1} parent=1 // pred_fallthru
      _
    // Predicated region
    $region118: #{byol_forward.1} parent=1 // pred_check
      _
    $region119: #{byol_forward.1} parent=1 // pred_check_branch
      %134 = sbr.rel (0) target = $region121
    $region120: #{byol_forward.1} parent=1 // pred_region
      _
    $region121: #{byol_forward.1} parent=1 // pred_fallthru
      _
    // Predicated region
    $region122: #{byol_forward.1} parent=1 // pred_check
      _
    $region123: #{byol_forward.1} parent=1 // pred_check_branch
      %136 = sbr.rel (0) target = $region125
    $region124: #{byol_forward.1} parent=1 // pred_region
      _
    $region125: #{byol_forward.1} parent=1 // pred_fallthru
      _
    // Predicated region
    $region126: #{byol_forward.1} parent=1 // pred_check
      _
    $region127: #{byol_forward.1} parent=1 // pred_check_branch
      %138 = sbr.rel (0) target = $region129
    $region128: #{byol_forward.1} parent=1 // pred_region
      _
    $region129: #{byol_forward.1} parent=1 // pred_fallthru
      _
    %v140 = vld [vmem:[%s1] sm:$0x3]
    %v141 = vpack.c.bf16 %v140, %v140
    %v142 = vld [vmem:[%s5] sm:$0xf]
    %v143 = vld [vmem:[%s5 + $0x4] sm:$0xf]
    %v144 = vld [vmem:[%s5 + $0x8] sm:$0xf]
    %v145 = vld [vmem:[%s5 + $0xc] sm:$0xf]
    %v146 = vld [vmem:[%s5 + $0x10] sm:$0xf]
    %v147 = vld [vmem:[%s5 + $0x14] sm:$0xf]
    %v148 = vld [vmem:[%s5 + $0x18] sm:$0xf]
    %v149 = vld [vmem:[%s5 + $0x1c] sm:$0xf]
    %v150 = vld [vmem:[%s5 + $0x20] sm:$0xf]
    %v151 = vld [vmem:[%s5 + $0x24] sm:$0xf]
    %v152 = vld [vmem:[%s5 + $0x28] sm:$0xf]
    %v153 = vld [vmem:[%s5 + $0x2c] sm:$0xf]
    %v154 = vld [vmem:[%s5 + $0x30] sm:$0xf]
    %v155 = vld [vmem:[%s5 + $0x34] sm:$0xf]
    %v156 = vld [vmem:[%s5 + $0x38] sm:$0xf]
    %v157 = vld [vmem:[%s5 + $0x3c] sm:$0xf]
    %v158 = vld [vmem:[%s7] sm:$0x1]
    %v160 = vlaneseq
    %v161 = vshrl.u32 %v160, 7
    %v162 = vsub.s32 0, %v161
    %v163 = vrot.slane %v158, %v162
    %v181 = vunpack.c.l.b16 %v142
    %v182 = vunpack.c.l.b16 %v143
    %v183 = vunpack.c.l.b16 %v144
    %v184 = vunpack.c.l.b16 %v145
    %v185 = vunpack.c.l.b16 %v146
    %v186 = vunpack.c.l.b16 %v147
    %v187 = vunpack.c.l.b16 %v148
    %v188 = vunpack.c.l.b16 %v149
    %v189 = vunpack.c.l.b16 %v150
    %v190 = vunpack.c.l.b16 %v151
    %v191 = vunpack.c.l.b16 %v152
    %v192 = vunpack.c.l.b16 %v153
    %v193 = vunpack.c.l.b16 %v154
    %v194 = vunpack.c.l.b16 %v155
    %v195 = vunpack.c.l.b16 %v156
    %v196 = vunpack.c.l.b16 %v157
    %v197 = vpack.c.b16 %v182, %v181
    %v198 = vpack.c.b16 %v184, %v183
    %v199 = vpack.c.b16 %v186, %v185
    %v200 = vpack.c.b16 %v188, %v187
    %v201 = vpack.c.b16 %v190, %v189
    %v202 = vpack.c.b16 %v192, %v191
    %v203 = vpack.c.b16 %v194, %v193
    %v204 = vpack.c.b16 %v196, %v195
    %213 = vmatprep.subr.bf16.mxu0 0
    %214 = vmatpush1.bf16.msra.mxu0 %v204
    %215 = vmatprep.subr.bf16.mxu0 0
    %216 = vmatpush1.bf16.msra.mxu0 %v203
    %217 = vmatprep.subr.bf16.mxu0 0
    %218 = vmatpush1.bf16.msra.mxu0 %v202
    %219 = vmatprep.subr.bf16.mxu0 0
    %220 = vmatpush1.bf16.msra.mxu0 %v201
    %221 = vmatprep.subr.bf16.mxu0 0
    %222 = vmatpush1.bf16.msra.mxu0 %v200
    %223 = vmatprep.subr.bf16.mxu0 0
    %224 = vmatpush1.bf16.msra.mxu0 %v199
    %225 = vmatprep.subr.bf16.mxu0 0
    %226 = vmatpush1.bf16.msra.mxu0 %v198
    %227 = vmatprep.subr.bf16.mxu0 0
    %228 = vmatpush1.bf16.msra.mxu0 %v197
    %229 = vmatprep.subr.bf16.mxu0 0
    %230 = vmatpush2.bf16.msra.mxu0 0
    %231 = vmatprep.subr.bf16.mxu0 0
    %232 = vmatpush2.bf16.msra.mxu0 0
    %233 = vmatprep.subr.bf16.mxu0 0
    %234 = vmatpush2.bf16.msra.mxu0 0
    %235 = vmatprep.subr.bf16.mxu0 0
    %236 = vmatpush2.bf16.msra.mxu0 0
    %237 = vmatprep.subr.bf16.mxu0 0
    %238 = vmatpush2.bf16.msra.mxu0 0
    %239 = vmatprep.subr.bf16.mxu0 0
    %240 = vmatpush2.bf16.msra.mxu0 0
    %241 = vmatprep.subr.bf16.mxu0 0
    %242 = vmatpush2.bf16.msra.mxu0 0
    %243 = vmatprep.subr.bf16.mxu0 0
    %244 = vmatpush2.bf16.msra.mxu0 0
    %245 = vmatprep.mubr.bf16.mxu0 0
    %246 = vmatmul.mubr.bf16.gmra.mxu0 %v141
    %v247 = vpop.f32.mrf.mxu0
    %v248 = vadd.f32 %v163, %v247
    %v249 = vpop.f32.mrf.mxu0
    %v250 = vpop.f32.mrf.mxu0
    %v251 = vpop.f32.mrf.mxu0
    %252 = vdwg.mxu0
    %v253 = vpack.c.bf16 %v248, %v248
    %v254 = vld [vmem:[%s9] sm:$0xf]
    %v255 = vld [vmem:[%s9 + $0x4] sm:$0xf]
    %v256 = vld [vmem:[%s9 + $0x8] sm:$0xf]
    %v257 = vld [vmem:[%s9 + $0xc] sm:$0xf]
    %v258 = vld [vmem:[%s9 + $0x10] sm:$0xf]
    %v259 = vld [vmem:[%s9 + $0x14] sm:$0xf]
    %v260 = vld [vmem:[%s9 + $0x18] sm:$0xf]
    %v261 = vld [vmem:[%s9 + $0x1c] sm:$0xf]
    %v262 = vld [vmem:[%s9 + $0x20] sm:$0xf]
    %v263 = vld [vmem:[%s9 + $0x24] sm:$0xf]
    %v264 = vld [vmem:[%s9 + $0x28] sm:$0xf]
    %v265 = vld [vmem:[%s9 + $0x2c] sm:$0xf]
    %v266 = vld [vmem:[%s9 + $0x30] sm:$0xf]
    %v267 = vld [vmem:[%s9 + $0x34] sm:$0xf]
    %v268 = vld [vmem:[%s9 + $0x38] sm:$0xf]
    %v269 = vld [vmem:[%s9 + $0x3c] sm:$0xf]
    %v270 = vld [vmem:[%s11] sm:$0x1]
    %v272 = vlaneseq
    %v273 = vshrl.u32 %v272, 7
    %v274 = vsub.s32 0, %v273
    %v275 = vrot.slane %v270, %v274
    %v293 = vunpack.c.l.b16 %v254
    %v294 = vunpack.c.l.b16 %v255
    %v295 = vunpack.c.l.b16 %v256
    %v296 = vunpack.c.l.b16 %v257
    %v297 = vunpack.c.l.b16 %v258
    %v298 = vunpack.c.l.b16 %v259
    %v299 = vunpack.c.l.b16 %v260
    %v300 = vunpack.c.l.b16 %v261
    %v301 = vunpack.c.l.b16 %v262
    %v302 = vunpack.c.l.b16 %v263
    %v303 = vunpack.c.l.b16 %v264
    %v304 = vunpack.c.l.b16 %v265
    %v305 = vunpack.c.l.b16 %v266
    %v306 = vunpack.c.l.b16 %v267
    %v307 = vunpack.c.l.b16 %v268
    %v308 = vunpack.c.l.b16 %v269
    %v309 = vpack.c.b16 %v294, %v293
    %v310 = vpack.c.b16 %v296, %v295
    %v311 = vpack.c.b16 %v298, %v297
    %v312 = vpack.c.b16 %v300, %v299
    %v313 = vpack.c.b16 %v302, %v301
    %v314 = vpack.c.b16 %v304, %v303
    %v315 = vpack.c.b16 %v306, %v305
    %v316 = vpack.c.b16 %v308, %v307
    %325 = vmatprep.subr.bf16.mxu0 0
    %326 = vmatpush1.bf16.msra.mxu0 %v316
    %327 = vmatprep.subr.bf16.mxu0 0
    %328 = vmatpush1.bf16.msra.mxu0 %v315
    %329 = vmatprep.subr.bf16.mxu0 0
    %330 = vmatpush1.bf16.msra.mxu0 %v314
    %331 = vmatprep.subr.bf16.mxu0 0
    %332 = vmatpush1.bf16.msra.mxu0 %v313
    %333 = vmatprep.subr.bf16.mxu0 0
    %334 = vmatpush1.bf16.msra.mxu0 %v312
    %335 = vmatprep.subr.bf16.mxu0 0
    %336 = vmatpush1.bf16.msra.mxu0 %v311
    %337 = vmatprep.subr.bf16.mxu0 0
    %338 = vmatpush1.bf16.msra.mxu0 %v310
    %339 = vmatprep.subr.bf16.mxu0 0
    %340 = vmatpush1.bf16.msra.mxu0 %v309
    %341 = vmatprep.subr.bf16.mxu0 0
    %342 = vmatpush2.bf16.msra.mxu0 0
    %343 = vmatprep.subr.bf16.mxu0 0
    %344 = vmatpush2.bf16.msra.mxu0 0
    %345 = vmatprep.subr.bf16.mxu0 0
    %346 = vmatpush2.bf16.msra.mxu0 0
    %347 = vmatprep.subr.bf16.mxu0 0
    %348 = vmatpush2.bf16.msra.mxu0 0
    %349 = vmatprep.subr.bf16.mxu0 0
    %350 = vmatpush2.bf16.msra.mxu0 0
    %351 = vmatprep.subr.bf16.mxu0 0
    %352 = vmatpush2.bf16.msra.mxu0 0
    %353 = vmatprep.subr.bf16.mxu0 0
    %354 = vmatpush2.bf16.msra.mxu0 0
    %355 = vmatprep.subr.bf16.mxu0 0
    %356 = vmatpush2.bf16.msra.mxu0 0
    %357 = vmatprep.mubr.bf16.mxu0 0
    %358 = vmatmul.mubr.bf16.gmra.mxu0 %v253
    %v359 = vpop.f32.mrf.mxu0
    %v360 = vadd.f32 %v275, %v359
    %v361 = vpop.f32.mrf.mxu0
    %v362 = vpop.f32.mrf.mxu0
    %v363 = vpop.f32.mrf.mxu0
    %364 = vdwg.mxu0
    %vm365 = vcmask 1041408
    %v366 = vsel %vm365, %v360, 0.0
    %v367 = vrot.slane %v366, 4
    %v368 = vadd.f32 %v366, %v367
    %v369 = vrot.slane %v368, 2
    %v370 = vadd.f32 %v368, %v369
    %v371 = vrot.slane %v370, 1
    %v372 = vadd.f32 %v370, %v371
    %v373 = vrcp.pop 2.0
    %v374 = vmul.f32 %v372, %v373
    %v375 = vmul.f32 %v360, %v360
    %v376 = vsel %vm365, %v375, 0.0
    %v377 = vrot.slane %v376, 4
    %v378 = vadd.f32 %v376, %v377
    %v379 = vrot.slane %v378, 2
    %v380 = vadd.f32 %v378, %v379
    %v381 = vrot.slane %v380, 1
    %v382 = vadd.f32 %v380, %v381
    %v383 = vmul.f32 %v382, %v373
    %v384 = vmul.f32 %v374, %v374
    %v385 = vsub.f32 %v383, %v384
    %v386 = vmax.f32 %v385, 0.0
    %v387 = vld [vmem:[%s13] sm:$0x1]
    %v388 = vadd.f32 %v386, 1e-05
    %v389 = vrsqrt.pop %v388
    %v390 = vmul.f32 %v387, %v389
    %v391 = vld [vmem:[%s15] sm:$0x1]
    %v392 = vmul.f32 %v374, %v390
    %v393 = vsub.f32 %v391, %v392
    %v395 = vlaneseq
    %v396 = vshrl.u32 %v395, 7
    %v397 = vsub.s32 0, %v396
    %v398 = vrot.slane %v390, %v397
    %v400 = vmul.f32 %v360, %v398
    %v402 = vlaneseq
    %v403 = vshrl.u32 %v402, 7
    %v404 = vsub.s32 0, %v403
    %v405 = vrot.slane %v393, %v404
    %v407 = vadd.f32 %v400, %v405
    %v408 = vmax.f32 %v407, 0.0
    %v409 = vpack.c.bf16 %v408, %v408
    %v410 = vld [vmem:[%s17] sm:$0xf]
    %v411 = vld [vmem:[%s17 + $0x4] sm:$0xf]
    %v412 = vld [vmem:[%s17 + $0x8] sm:$0xf]
    %v413 = vld [vmem:[%s17 + $0xc] sm:$0xf]
    %v414 = vld [vmem:[%s17 + $0x10] sm:$0xf]
    %v415 = vld [vmem:[%s17 + $0x14] sm:$0xf]
    %v416 = vld [vmem:[%s17 + $0x18] sm:$0xf]
    %v417 = vld [vmem:[%s17 + $0x1c] sm:$0xf]
    %v418 = vld [vmem:[%s17 + $0x20] sm:$0xf]
    %v419 = vld [vmem:[%s17 + $0x24] sm:$0xf]
    %v420 = vld [vmem:[%s17 + $0x28] sm:$0xf]
    %v421 = vld [vmem:[%s17 + $0x2c] sm:$0xf]
    %v422 = vld [vmem:[%s17 + $0x30] sm:$0xf]
    %v423 = vld [vmem:[%s17 + $0x34] sm:$0xf]
    %v424 = vld [vmem:[%s17 + $0x38] sm:$0xf]
    %v425 = vld [vmem:[%s17 + $0x3c] sm:$0xf]
    %v426 = vld [vmem:[%s19] sm:$0x1]
    %v428 = vlaneseq
    %v429 = vshrl.u32 %v428, 7
    %v430 = vsub.s32 0, %v429
    %v431 = vrot.slane %v426, %v430
    %v449 = vunpack.c.l.b16 %v410
    %v450 = vunpack.c.l.b16 %v411
    %v451 = vunpack.c.l.b16 %v412
    %v452 = vunpack.c.l.b16 %v413
    %v453 = vunpack.c.l.b16 %v414
    %v454 = vunpack.c.l.b16 %v415
    %v455 = vunpack.c.l.b16 %v416
    %v456 = vunpack.c.l.b16 %v417
    %v457 = vunpack.c.l.b16 %v418
    %v458 = vunpack.c.l.b16 %v419
    %v459 = vunpack.c.l.b16 %v420
    %v460 = vunpack.c.l.b16 %v421
    %v461 = vunpack.c.l.b16 %v422
    %v462 = vunpack.c.l.b16 %v423
    %v463 = vunpack.c.l.b16 %v424
    %v464 = vunpack.c.l.b16 %v425
    %v465 = vpack.c.b16 %v450, %v449
    %v466 = vpack.c.b16 %v452, %v451
    %v467 = vpack.c.b16 %v454, %v453
    %v468 = vpack.c.b16 %v456, %v455
    %v469 = vpack.c.b16 %v458, %v457
    %v470 = vpack.c.b16 %v460, %v459
    %v471 = vpack.c.b16 %v462, %v461
    %v472 = vpack.c.b16 %v464, %v463
    %481 = vmatprep.subr.bf16.mxu0 0
    %482 = vmatpush1.bf16.msra.mxu0 %v472
    %483 = vmatprep.subr.bf16.mxu0 0
    %484 = vmatpush1.bf16.msra.mxu0 %v471
    %485 = vmatprep.subr.bf16.mxu0 0
    %486 = vmatpush1.bf16.msra.mxu0 %v470
    %487 = vmatprep.subr.bf16.mxu0 0
    %488 = vmatpush1.bf16.msra.mxu0 %v469
    %489 = vmatprep.subr.bf16.mxu0 0
    %490 = vmatpush1.bf16.msra.mxu0 %v468
    %491 = vmatprep.subr.bf16.mxu0 0
    %492 = vmatpush1.bf16.msra.mxu0 %v467
    %493 = vmatprep.subr.bf16.mxu0 0
    %494 = vmatpush1.bf16.msra.mxu0 %v466
    %495 = vmatprep.subr.bf16.mxu0 0
    %496 = vmatpush1.bf16.msra.mxu0 %v465
    %497 = vmatprep.subr.bf16.mxu0 0
    %498 = vmatpush2.bf16.msra.mxu0 0
    %499 = vmatprep.subr.bf16.mxu0 0
    %500 = vmatpush2.bf16.msra.mxu0 0
    %501 = vmatprep.subr.bf16.mxu0 0
    %502 = vmatpush2.bf16.msra.mxu0 0
    %503 = vmatprep.subr.bf16.mxu0 0
    %504 = vmatpush2.bf16.msra.mxu0 0
    %505 = vmatprep.subr.bf16.mxu0 0
    %506 = vmatpush2.bf16.msra.mxu0 0
    %507 = vmatprep.subr.bf16.mxu0 0
    %508 = vmatpush2.bf16.msra.mxu0 0
    %509 = vmatprep.subr.bf16.mxu0 0
    %510 = vmatpush2.bf16.msra.mxu0 0
    %511 = vmatprep.subr.bf16.mxu0 0
    %512 = vmatpush2.bf16.msra.mxu0 0
    %513 = vmatprep.mubr.bf16.mxu0 0
    %514 = vmatmul.mubr.bf16.gmra.mxu0 %v409
    %v515 = vpop.f32.mrf.mxu0
    %v516 = vadd.f32 %v431, %v515
    %v517 = vpop.f32.mrf.mxu0
    %v518 = vpop.f32.mrf.mxu0
    %v519 = vpop.f32.mrf.mxu0
    %520 = vdwg.mxu0
    %v521 = vpack.c.bf16 %v516, %v516
    %v522 = vld [vmem:[%s21] sm:$0xf]
    %v523 = vld [vmem:[%s21 + $0x4] sm:$0xf]
    %v524 = vld [vmem:[%s21 + $0x8] sm:$0xf]
    %v525 = vld [vmem:[%s21 + $0xc] sm:$0xf]
    %v526 = vld [vmem:[%s21 + $0x10] sm:$0xf]
    %v527 = vld [vmem:[%s21 + $0x14] sm:$0xf]
    %v528 = vld [vmem:[%s21 + $0x18] sm:$0xf]
    %v529 = vld [vmem:[%s21 + $0x1c] sm:$0xf]
    %v530 = vld [vmem:[%s21 + $0x20] sm:$0xf]
    %v531 = vld [vmem:[%s21 + $0x24] sm:$0xf]
    %v532 = vld [vmem:[%s21 + $0x28] sm:$0xf]
    %v533 = vld [vmem:[%s21 + $0x2c] sm:$0xf]
    %v534 = vld [vmem:[%s21 + $0x30] sm:$0xf]
    %v535 = vld [vmem:[%s21 + $0x34] sm:$0xf]
    %v536 = vld [vmem:[%s21 + $0x38] sm:$0xf]
    %v537 = vld [vmem:[%s21 + $0x3c] sm:$0xf]
    %v538 = vld [vmem:[%s23] sm:$0x1]
    %v540 = vlaneseq
    %v541 = vshrl.u32 %v540, 7
    %v542 = vsub.s32 0, %v541
    %v543 = vrot.slane %v538, %v542
    %v561 = vunpack.c.l.b16 %v522
    %v562 = vunpack.c.l.b16 %v523
    %v563 = vunpack.c.l.b16 %v524
    %v564 = vunpack.c.l.b16 %v525
    %v565 = vunpack.c.l.b16 %v526
    %v566 = vunpack.c.l.b16 %v527
    %v567 = vunpack.c.l.b16 %v528
    %v568 = vunpack.c.l.b16 %v529
    %v569 = vunpack.c.l.b16 %v530
    %v570 = vunpack.c.l.b16 %v531
    %v571 = vunpack.c.l.b16 %v532
    %v572 = vunpack.c.l.b16 %v533
    %v573 = vunpack.c.l.b16 %v534
    %v574 = vunpack.c.l.b16 %v535
    %v575 = vunpack.c.l.b16 %v536
    %v576 = vunpack.c.l.b16 %v537
    %v577 = vpack.c.b16 %v562, %v561
    %v578 = vpack.c.b16 %v564, %v563
    %v579 = vpack.c.b16 %v566, %v565
    %v580 = vpack.c.b16 %v568, %v567
    %v581 = vpack.c.b16 %v570, %v569
    %v582 = vpack.c.b16 %v572, %v571
    %v583 = vpack.c.b16 %v574, %v573
    %v584 = vpack.c.b16 %v576, %v575
    %593 = vmatprep.subr.bf16.mxu0 0
    %594 = vmatpush1.bf16.msra.mxu0 %v584
    %595 = vmatprep.subr.bf16.mxu0 0
    %596 = vmatpush1.bf16.msra.mxu0 %v583
    %597 = vmatprep.subr.bf16.mxu0 0
    %598 = vmatpush1.bf16.msra.mxu0 %v582
    %599 = vmatprep.subr.bf16.mxu0 0
    %600 = vmatpush1.bf16.msra.mxu0 %v581
    %601 = vmatprep.subr.bf16.mxu0 0
    %602 = vmatpush1.bf16.msra.mxu0 %v580
    %603 = vmatprep.subr.bf16.mxu0 0
    %604 = vmatpush1.bf16.msra.mxu0 %v579
    %605 = vmatprep.subr.bf16.mxu0 0
    %606 = vmatpush1.bf16.msra.mxu0 %v578
    %607 = vmatprep.subr.bf16.mxu0 0
    %608 = vmatpush1.bf16.msra.mxu0 %v577
    %609 = vmatprep.subr.bf16.mxu0 0
    %610 = vmatpush2.bf16.msra.mxu0 0
    %611 = vmatprep.subr.bf16.mxu0 0
    %612 = vmatpush2.bf16.msra.mxu0 0
    %613 = vmatprep.subr.bf16.mxu0 0
    %614 = vmatpush2.bf16.msra.mxu0 0
    %615 = vmatprep.subr.bf16.mxu0 0
    %616 = vmatpush2.bf16.msra.mxu0 0
    %617 = vmatprep.subr.bf16.mxu0 0
    %618 = vmatpush2.bf16.msra.mxu0 0
    %619 = vmatprep.subr.bf16.mxu0 0
    %620 = vmatpush2.bf16.msra.mxu0 0
    %621 = vmatprep.subr.bf16.mxu0 0
    %622 = vmatpush2.bf16.msra.mxu0 0
    %623 = vmatprep.subr.bf16.mxu0 0
    %624 = vmatpush2.bf16.msra.mxu0 0
    %625 = vmatprep.mubr.bf16.mxu0 0
    %626 = vmatmul.mubr.bf16.gmra.mxu0 %v521
    %v627 = vpop.f32.mrf.mxu0
    %v628 = vadd.f32 %v543, %v627
    %v629 = vpop.f32.mrf.mxu0
    %v630 = vpop.f32.mrf.mxu0
    %v631 = vpop.f32.mrf.mxu0
    %632 = vdwg.mxu0
    %v633 = vsel %vm365, %v628, 0.0
    %v634 = vrot.slane %v633, 4
    %v635 = vadd.f32 %v633, %v634
    %v636 = vrot.slane %v635, 2
    %v637 = vadd.f32 %v635, %v636
    %v638 = vrot.slane %v637, 1
    %v639 = vadd.f32 %v637, %v638
    %v640 = vmul.f32 %v639, %v373
    %v641 = vmul.f32 %v628, %v628
    %v642 = vsel %vm365, %v641, 0.0
    %v643 = vrot.slane %v642, 4
    %v644 = vadd.f32 %v642, %v643
    %v645 = vrot.slane %v644, 2
    %v646 = vadd.f32 %v644, %v645
    %v647 = vrot.slane %v646, 1
    %v648 = vadd.f32 %v646, %v647
    %v649 = vmul.f32 %v648, %v373
    %v650 = vmul.f32 %v640, %v640
    %v651 = vsub.f32 %v649, %v650
    %v652 = vmax.f32 %v651, 0.0
    %v653 = vld [vmem:[%s25] sm:$0x1]
    %v654 = vadd.f32 %v652, 1e-05
    %v655 = vrsqrt.pop %v654
    %v656 = vmul.f32 %v653, %v655
    %v657 = vld [vmem:[%s27] sm:$0x1]
    %v658 = vmul.f32 %v640, %v656
    %v659 = vsub.f32 %v657, %v658
    %v661 = vlaneseq
    %v662 = vshrl.u32 %v661, 7
    %v663 = vsub.s32 0, %v662
    %v664 = vrot.slane %v656, %v663
    %v666 = vmul.f32 %v628, %v664
    %v668 = vlaneseq
    %v669 = vshrl.u32 %v668, 7
    %v670 = vsub.s32 0, %v669
    %v671 = vrot.slane %v659, %v670
    %v673 = vadd.f32 %v666, %v671
    %v674 = vmax.f32 %v673, 0.0
    %v675 = vpack.c.bf16 %v674, %v674
    %v676 = vld [vmem:[%s29] sm:$0xf]
    %v677 = vld [vmem:[%s29 + $0x4] sm:$0xf]
    %v678 = vld [vmem:[%s29 + $0x8] sm:$0xf]
    %v679 = vld [vmem:[%s29 + $0xc] sm:$0xf]
    %v680 = vld [vmem:[%s29 + $0x10] sm:$0xf]
    %v681 = vld [vmem:[%s29 + $0x14] sm:$0xf]
    %v682 = vld [vmem:[%s29 + $0x18] sm:$0xf]
    %v683 = vld [vmem:[%s29 + $0x1c] sm:$0xf]
    %v684 = vld [vmem:[%s29 + $0x20] sm:$0xf]
    %v685 = vld [vmem:[%s29 + $0x24] sm:$0xf]
    %v686 = vld [vmem:[%s29 + $0x28] sm:$0xf]
    %v687 = vld [vmem:[%s29 + $0x2c] sm:$0xf]
    %v688 = vld [vmem:[%s29 + $0x30] sm:$0xf]
    %v689 = vld [vmem:[%s29 + $0x34] sm:$0xf]
    %v690 = vld [vmem:[%s29 + $0x38] sm:$0xf]
    %v691 = vld [vmem:[%s29 + $0x3c] sm:$0xf]
    %v692 = vld [vmem:[%s31] sm:$0x1]
    %v694 = vlaneseq
    %v695 = vshrl.u32 %v694, 7
    %v696 = vsub.s32 0, %v695
    %v697 = vrot.slane %v692, %v696
    %v715 = vunpack.c.l.b16 %v676
    %v716 = vunpack.c.l.b16 %v677
    %v717 = vunpack.c.l.b16 %v678
    %v718 = vunpack.c.l.b16 %v679
    %v719 = vunpack.c.l.b16 %v680
    %v720 = vunpack.c.l.b16 %v681
    %v721 = vunpack.c.l.b16 %v682
    %v722 = vunpack.c.l.b16 %v683
    %v723 = vunpack.c.l.b16 %v684
    %v724 = vunpack.c.l.b16 %v685
    %v725 = vunpack.c.l.b16 %v686
    %v726 = vunpack.c.l.b16 %v687
    %v727 = vunpack.c.l.b16 %v688
    %v728 = vunpack.c.l.b16 %v689
    %v729 = vunpack.c.l.b16 %v690
    %v730 = vunpack.c.l.b16 %v691
    %v731 = vpack.c.b16 %v716, %v715
    %v732 = vpack.c.b16 %v718, %v717
    %v733 = vpack.c.b16 %v720, %v719
    %v734 = vpack.c.b16 %v722, %v721
    %v735 = vpack.c.b16 %v724, %v723
    %v736 = vpack.c.b16 %v726, %v725
    %v737 = vpack.c.b16 %v728, %v727
    %v738 = vpack.c.b16 %v730, %v729
    %747 = vmatprep.subr.bf16.mxu0 0
    %748 = vmatpush1.bf16.msra.mxu0 %v738
    %749 = vmatprep.subr.bf16.mxu0 0
    %750 = vmatpush1.bf16.msra.mxu0 %v737
    %751 = vmatprep.subr.bf16.mxu0 0
    %752 = vmatpush1.bf16.msra.mxu0 %v736
    %753 = vmatprep.subr.bf16.mxu0 0
    %754 = vmatpush1.bf16.msra.mxu0 %v735
    %755 = vmatprep.subr.bf16.mxu0 0
    %756 = vmatpush1.bf16.msra.mxu0 %v734
    %757 = vmatprep.subr.bf16.mxu0 0
    %758 = vmatpush1.bf16.msra.mxu0 %v733
    %759 = vmatprep.subr.bf16.mxu0 0
    %760 = vmatpush1.bf16.msra.mxu0 %v732
    %761 = vmatprep.subr.bf16.mxu0 0
    %762 = vmatpush1.bf16.msra.mxu0 %v731
    %763 = vmatprep.subr.bf16.mxu0 0
    %764 = vmatpush2.bf16.msra.mxu0 0
    %765 = vmatprep.subr.bf16.mxu0 0
    %766 = vmatpush2.bf16.msra.mxu0 0
    %767 = vmatprep.subr.bf16.mxu0 0
    %768 = vmatpush2.bf16.msra.mxu0 0
    %769 = vmatprep.subr.bf16.mxu0 0
    %770 = vmatpush2.bf16.msra.mxu0 0
    %771 = vmatprep.subr.bf16.mxu0 0
    %772 = vmatpush2.bf16.msra.mxu0 0
    %773 = vmatprep.subr.bf16.mxu0 0
    %774 = vmatpush2.bf16.msra.mxu0 0
    %775 = vmatprep.subr.bf16.mxu0 0
    %776 = vmatpush2.bf16.msra.mxu0 0
    %777 = vmatprep.subr.bf16.mxu0 0
    %778 = vmatpush2.bf16.msra.mxu0 0
    %779 = vmatprep.mubr.bf16.mxu0 0
    %780 = vmatmul.mubr.bf16.gmra.mxu0 %v675
    %v781 = vpop.f32.mrf.mxu0
    %v782 = vadd.f32 %v697, %v781
    %v783 = vpop.f32.mrf.mxu0
    %v784 = vpop.f32.mrf.mxu0
    %v785 = vpop.f32.mrf.mxu0
    %786 = vdwg.mxu0
    %787 = vst [vmem:[#allocation2] sm:$0x3] %v782
    %v788 = vld [vmem:[%s3] sm:$0x3]
    %v789 = vpack.c.bf16 %v788, %v788
    %v790 = vld [vmem:[%s33] sm:$0xf]
    %v791 = vld [vmem:[%s33 + $0x4] sm:$0xf]
    %v792 = vld [vmem:[%s33 + $0x8] sm:$0xf]
    %v793 = vld [vmem:[%s33 + $0xc] sm:$0xf]
    %v794 = vld [vmem:[%s33 + $0x10] sm:$0xf]
    %v795 = vld [vmem:[%s33 + $0x14] sm:$0xf]
    %v796 = vld [vmem:[%s33 + $0x18] sm:$0xf]
    %v797 = vld [vmem:[%s33 + $0x1c] sm:$0xf]
    %v798 = vld [vmem:[%s33 + $0x20] sm:$0xf]
    %v799 = vld [vmem:[%s33 + $0x24] sm:$0xf]
    %v800 = vld [vmem:[%s33 + $0x28] sm:$0xf]
    %v801 = vld [vmem:[%s33 + $0x2c] sm:$0xf]
    %v802 = vld [vmem:[%s33 + $0x30] sm:$0xf]
    %v803 = vld [vmem:[%s33 + $0x34] sm:$0xf]
    %v804 = vld [vmem:[%s33 + $0x38] sm:$0xf]
    %v805 = vld [vmem:[%s33 + $0x3c] sm:$0xf]
    %v806 = vld [vmem:[%s35] sm:$0x1]
    %v808 = vlaneseq
    %v809 = vshrl.u32 %v808, 7
    %v810 = vsub.s32 0, %v809
    %v811 = vrot.slane %v806, %v810
    %v829 = vunpack.c.l.b16 %v790
    %v830 = vunpack.c.l.b16 %v791
    %v831 = vunpack.c.l.b16 %v792
    %v832 = vunpack.c.l.b16 %v793
    %v833 = vunpack.c.l.b16 %v794
    %v834 = vunpack.c.l.b16 %v795
    %v835 = vunpack.c.l.b16 %v796
    %v836 = vunpack.c.l.b16 %v797
    %v837 = vunpack.c.l.b16 %v798
    %v838 = vunpack.c.l.b16 %v799
    %v839 = vunpack.c.l.b16 %v800
    %v840 = vunpack.c.l.b16 %v801
    %v841 = vunpack.c.l.b16 %v802
    %v842 = vunpack.c.l.b16 %v803
    %v843 = vunpack.c.l.b16 %v804
    %v844 = vunpack.c.l.b16 %v805
    %v845 = vpack.c.b16 %v830, %v829
    %v846 = vpack.c.b16 %v832, %v831
    %v847 = vpack.c.b16 %v834, %v833
    %v848 = vpack.c.b16 %v836, %v835
    %v849 = vpack.c.b16 %v838, %v837
    %v850 = vpack.c.b16 %v840, %v839
    %v851 = vpack.c.b16 %v842, %v841
    %v852 = vpack.c.b16 %v844, %v843
    %861 = vmatprep.subr.bf16.mxu0 0
    %862 = vmatpush1.bf16.msra.mxu0 %v852
    %863 = vmatprep.subr.bf16.mxu0 0
    %864 = vmatpush1.bf16.msra.mxu0 %v851
    %865 = vmatprep.subr.bf16.mxu0 0
    %866 = vmatpush1.bf16.msra.mxu0 %v850
    %867 = vmatprep.subr.bf16.mxu0 0
    %868 = vmatpush1.bf16.msra.mxu0 %v849
    %869 = vmatprep.subr.bf16.mxu0 0
    %870 = vmatpush1.bf16.msra.mxu0 %v848
    %871 = vmatprep.subr.bf16.mxu0 0
    %872 = vmatpush1.bf16.msra.mxu0 %v847
    %873 = vmatprep.subr.bf16.mxu0 0
    %874 = vmatpush1.bf16.msra.mxu0 %v846
    %875 = vmatprep.subr.bf16.mxu0 0
    %876 = vmatpush1.bf16.msra.mxu0 %v845
    %877 = vmatprep.subr.bf16.mxu0 0
    %878 = vmatpush2.bf16.msra.mxu0 0
    %879 = vmatprep.subr.bf16.mxu0 0
    %880 = vmatpush2.bf16.msra.mxu0 0
    %881 = vmatprep.subr.bf16.mxu0 0
    %882 = vmatpush2.bf16.msra.mxu0 0
    %883 = vmatprep.subr.bf16.mxu0 0
    %884 = vmatpush2.bf16.msra.mxu0 0
    %885 = vmatprep.subr.bf16.mxu0 0
    %886 = vmatpush2.bf16.msra.mxu0 0
    %887 = vmatprep.subr.bf16.mxu0 0
    %888 = vmatpush2.bf16.msra.mxu0 0
    %889 = vmatprep.subr.bf16.mxu0 0
    %890 = vmatpush2.bf16.msra.mxu0 0
    %891 = vmatprep.subr.bf16.mxu0 0
    %892 = vmatpush2.bf16.msra.mxu0 0
    %893 = vmatprep.mubr.bf16.mxu0 0
    %894 = vmatmul.mubr.bf16.gmra.mxu0 %v789
    %v895 = vpop.f32.mrf.mxu0
    %v896 = vadd.f32 %v811, %v895
    %v897 = vpop.f32.mrf.mxu0
    %v898 = vpop.f32.mrf.mxu0
    %v899 = vpop.f32.mrf.mxu0
    %900 = vdwg.mxu0
    %v901 = vpack.c.bf16 %v896, %v896
    %v902 = vld [vmem:[%s37] sm:$0xf]
    %v903 = vld [vmem:[%s37 + $0x4] sm:$0xf]
    %v904 = vld [vmem:[%s37 + $0x8] sm:$0xf]
    %v905 = vld [vmem:[%s37 + $0xc] sm:$0xf]
    %v906 = vld [vmem:[%s37 + $0x10] sm:$0xf]
    %v907 = vld [vmem:[%s37 + $0x14] sm:$0xf]
    %v908 = vld [vmem:[%s37 + $0x18] sm:$0xf]
    %v909 = vld [vmem:[%s37 + $0x1c] sm:$0xf]
    %v910 = vld [vmem:[%s37 + $0x20] sm:$0xf]
    %v911 = vld [vmem:[%s37 + $0x24] sm:$0xf]
    %v912 = vld [vmem:[%s37 + $0x28] sm:$0xf]
    %v913 = vld [vmem:[%s37 + $0x2c] sm:$0xf]
    %v914 = vld [vmem:[%s37 + $0x30] sm:$0xf]
    %v915 = vld [vmem:[%s37 + $0x34] sm:$0xf]
    %v916 = vld [vmem:[%s37 + $0x38] sm:$0xf]
    %v917 = vld [vmem:[%s37 + $0x3c] sm:$0xf]
    %v918 = vld [vmem:[%s39] sm:$0x1]
    %v920 = vlaneseq
    %v921 = vshrl.u32 %v920, 7
    %v922 = vsub.s32 0, %v921
    %v923 = vrot.slane %v918, %v922
    %v941 = vunpack.c.l.b16 %v902
    %v942 = vunpack.c.l.b16 %v903
    %v943 = vunpack.c.l.b16 %v904
    %v944 = vunpack.c.l.b16 %v905
    %v945 = vunpack.c.l.b16 %v906
    %v946 = vunpack.c.l.b16 %v907
    %v947 = vunpack.c.l.b16 %v908
    %v948 = vunpack.c.l.b16 %v909
    %v949 = vunpack.c.l.b16 %v910
    %v950 = vunpack.c.l.b16 %v911
    %v951 = vunpack.c.l.b16 %v912
    %v952 = vunpack.c.l.b16 %v913
    %v953 = vunpack.c.l.b16 %v914
    %v954 = vunpack.c.l.b16 %v915
    %v955 = vunpack.c.l.b16 %v916
    %v956 = vunpack.c.l.b16 %v917
    %v957 = vpack.c.b16 %v942, %v941
    %v958 = vpack.c.b16 %v944, %v943
    %v959 = vpack.c.b16 %v946, %v945
    %v960 = vpack.c.b16 %v948, %v947
    %v961 = vpack.c.b16 %v950, %v949
    %v962 = vpack.c.b16 %v952, %v951
    %v963 = vpack.c.b16 %v954, %v953
    %v964 = vpack.c.b16 %v956, %v955
    %973 = vmatprep.subr.bf16.mxu0 0
    %974 = vmatpush1.bf16.msra.mxu0 %v964
    %975 = vmatprep.subr.bf16.mxu0 0
    %976 = vmatpush1.bf16.msra.mxu0 %v963
    %977 = vmatprep.subr.bf16.mxu0 0
    %978 = vmatpush1.bf16.msra.mxu0 %v962
    %979 = vmatprep.subr.bf16.mxu0 0
    %980 = vmatpush1.bf16.msra.mxu0 %v961
    %981 = vmatprep.subr.bf16.mxu0 0
    %982 = vmatpush1.bf16.msra.mxu0 %v960
    %983 = vmatprep.subr.bf16.mxu0 0
    %984 = vmatpush1.bf16.msra.mxu0 %v959
    %985 = vmatprep.subr.bf16.mxu0 0
    %986 = vmatpush1.bf16.msra.mxu0 %v958
    %987 = vmatprep.subr.bf16.mxu0 0
    %988 = vmatpush1.bf16.msra.mxu0 %v957
    %989 = vmatprep.subr.bf16.mxu0 0
    %990 = vmatpush2.bf16.msra.mxu0 0
    %991 = vmatprep.subr.bf16.mxu0 0
    %992 = vmatpush2.bf16.msra.mxu0 0
    %993 = vmatprep.subr.bf16.mxu0 0
    %994 = vmatpush2.bf16.msra.mxu0 0
    %995 = vmatprep.subr.bf16.mxu0 0
    %996 = vmatpush2.bf16.msra.mxu0 0
    %997 = vmatprep.subr.bf16.mxu0 0
    %998 = vmatpush2.bf16.msra.mxu0 0
    %999 = vmatprep.subr.bf16.mxu0 0
    %1000 = vmatpush2.bf16.msra.mxu0 0
    %1001 = vmatprep.subr.bf16.mxu0 0
    %1002 = vmatpush2.bf16.msra.mxu0 0
    %1003 = vmatprep.subr.bf16.mxu0 0
    %1004 = vmatpush2.bf16.msra.mxu0 0
    %1005 = vmatprep.mubr.bf16.mxu0 0
    %1006 = vmatmul.mubr.bf16.gmra.mxu0 %v901
    %v1007 = vpop.f32.mrf.mxu0
    %v1008 = vadd.f32 %v923, %v1007
    %v1009 = vpop.f32.mrf.mxu0
    %v1010 = vpop.f32.mrf.mxu0
    %v1011 = vpop.f32.mrf.mxu0
    %1012 = vdwg.mxu0
    %v1013 = vsel %vm365, %v1008, 0.0
    %v1014 = vrot.slane %v1013, 4
    %v1015 = vadd.f32 %v1013, %v1014
    %v1016 = vrot.slane %v1015, 2
    %v1017 = vadd.f32 %v1015, %v1016
    %v1018 = vrot.slane %v1017, 1
    %v1019 = vadd.f32 %v1017, %v1018
    %v1020 = vmul.f32 %v1019, %v373
    %v1021 = vmul.f32 %v1008, %v1008
    %v1022 = vsel %vm365, %v1021, 0.0
    %v1023 = vrot.slane %v1022, 4
    %v1024 = vadd.f32 %v1022, %v1023
    %v1025 = vrot.slane %v1024, 2
    %v1026 = vadd.f32 %v1024, %v1025
    %v1027 = vrot.slane %v1026, 1
    %v1028 = vadd.f32 %v1026, %v1027
    %v1029 = vmul.f32 %v1028, %v373
    %v1030 = vmul.f32 %v1020, %v1020
    %v1031 = vsub.f32 %v1029, %v1030
    %v1032 = vmax.f32 %v1031, 0.0
    %v1033 = vld [vmem:[%s41] sm:$0x1]
    %v1034 = vadd.f32 %v1032, 1e-05
    %v1035 = vrsqrt.pop %v1034
    %v1036 = vmul.f32 %v1033, %v1035
    %v1037 = vld [vmem:[%s43] sm:$0x1]
    %v1038 = vmul.f32 %v1020, %v1036
    %v1039 = vsub.f32 %v1037, %v1038
    %v1041 = vlaneseq
    %v1042 = vshrl.u32 %v1041, 7
    %v1043 = vsub.s32 0, %v1042
    %v1044 = vrot.slane %v1036, %v1043
    %v1046 = vmul.f32 %v1008, %v1044
    %v1048 = vlaneseq
    %v1049 = vshrl.u32 %v1048, 7
    %v1050 = vsub.s32 0, %v1049
    %v1051 = vrot.slane %v1039, %v1050
    %v1053 = vadd.f32 %v1046, %v1051
    %v1054 = vmax.f32 %v1053, 0.0
    %v1055 = vpack.c.bf16 %v1054, %v1054
    %v1056 = vld [vmem:[%s45] sm:$0xf]
    %v1057 = vld [vmem:[%s45 + $0x4] sm:$0xf]
    %v1058 = vld [vmem:[%s45 + $0x8] sm:$0xf]
    %v1059 = vld [vmem:[%s45 + $0xc] sm:$0xf]
    %v1060 = vld [vmem:[%s45 + $0x10] sm:$0xf]
    %v1061 = vld [vmem:[%s45 + $0x14] sm:$0xf]
    %v1062 = vld [vmem:[%s45 + $0x18] sm:$0xf]
    %v1063 = vld [vmem:[%s45 + $0x1c] sm:$0xf]
    %v1064 = vld [vmem:[%s45 + $0x20] sm:$0xf]
    %v1065 = vld [vmem:[%s45 + $0x24] sm:$0xf]
    %v1066 = vld [vmem:[%s45 + $0x28] sm:$0xf]
    %v1067 = vld [vmem:[%s45 + $0x2c] sm:$0xf]
    %v1068 = vld [vmem:[%s45 + $0x30] sm:$0xf]
    %v1069 = vld [vmem:[%s45 + $0x34] sm:$0xf]
    %v1070 = vld [vmem:[%s45 + $0x38] sm:$0xf]
    %v1071 = vld [vmem:[%s45 + $0x3c] sm:$0xf]
    %v1072 = vld [vmem:[%s47] sm:$0x1]
    %v1074 = vlaneseq
    %v1075 = vshrl.u32 %v1074, 7
    %v1076 = vsub.s32 0, %v1075
    %v1077 = vrot.slane %v1072, %v1076
    %v1095 = vunpack.c.l.b16 %v1056
    %v1096 = vunpack.c.l.b16 %v1057
    %v1097 = vunpack.c.l.b16 %v1058
    %v1098 = vunpack.c.l.b16 %v1059
    %v1099 = vunpack.c.l.b16 %v1060
    %v1100 = vunpack.c.l.b16 %v1061
    %v1101 = vunpack.c.l.b16 %v1062
    %v1102 = vunpack.c.l.b16 %v1063
    %v1103 = vunpack.c.l.b16 %v1064
    %v1104 = vunpack.c.l.b16 %v1065
    %v1105 = vunpack.c.l.b16 %v1066
    %v1106 = vunpack.c.l.b16 %v1067
    %v1107 = vunpack.c.l.b16 %v1068
    %v1108 = vunpack.c.l.b16 %v1069
    %v1109 = vunpack.c.l.b16 %v1070
    %v1110 = vunpack.c.l.b16 %v1071
    %v1111 = vpack.c.b16 %v1096, %v1095
    %v1112 = vpack.c.b16 %v1098, %v1097
    %v1113 = vpack.c.b16 %v1100, %v1099
    %v1114 = vpack.c.b16 %v1102, %v1101
    %v1115 = vpack.c.b16 %v1104, %v1103
    %v1116 = vpack.c.b16 %v1106, %v1105
    %v1117 = vpack.c.b16 %v1108, %v1107
    %v1118 = vpack.c.b16 %v1110, %v1109
    %1127 = vmatprep.subr.bf16.mxu0 0
    %1128 = vmatpush1.bf16.msra.mxu0 %v1118
    %1129 = vmatprep.subr.bf16.mxu0 0
    %1130 = vmatpush1.bf16.msra.mxu0 %v1117
    %1131 = vmatprep.subr.bf16.mxu0 0
    %1132 = vmatpush1.bf16.msra.mxu0 %v1116
    %1133 = vmatprep.subr.bf16.mxu0 0
    %1134 = vmatpush1.bf16.msra.mxu0 %v1115
    %1135 = vmatprep.subr.bf16.mxu0 0
    %1136 = vmatpush1.bf16.msra.mxu0 %v1114
    %1137 = vmatprep.subr.bf16.mxu0 0
    %1138 = vmatpush1.bf16.msra.mxu0 %v1113
    %1139 = vmatprep.subr.bf16.mxu0 0
    %1140 = vmatpush1.bf16.msra.mxu0 %v1112
    %1141 = vmatprep.subr.bf16.mxu0 0
    %1142 = vmatpush1.bf16.msra.mxu0 %v1111
    %1143 = vmatprep.subr.bf16.mxu0 0
    %1144 = vmatpush2.bf16.msra.mxu0 0
    %1145 = vmatprep.subr.bf16.mxu0 0
    %1146 = vmatpush2.bf16.msra.mxu0 0
    %1147 = vmatprep.subr.bf16.mxu0 0
    %1148 = vmatpush2.bf16.msra.mxu0 0
    %1149 = vmatprep.subr.bf16.mxu0 0
    %1150 = vmatpush2.bf16.msra.mxu0 0
    %1151 = vmatprep.subr.bf16.mxu0 0
    %1152 = vmatpush2.bf16.msra.mxu0 0
    %1153 = vmatprep.subr.bf16.mxu0 0
    %1154 = vmatpush2.bf16.msra.mxu0 0
    %1155 = vmatprep.subr.bf16.mxu0 0
    %1156 = vmatpush2.bf16.msra.mxu0 0
    %1157 = vmatprep.subr.bf16.mxu0 0
    %1158 = vmatpush2.bf16.msra.mxu0 0
    %1159 = vmatprep.mubr.bf16.mxu0 0
    %1160 = vmatmul.mubr.bf16.gmra.mxu0 %v1055
    %v1161 = vpop.f32.mrf.mxu0
    %v1162 = vadd.f32 %v1077, %v1161
    %v1163 = vpop.f32.mrf.mxu0
    %v1164 = vpop.f32.mrf.mxu0
    %v1165 = vpop.f32.mrf.mxu0
    %1166 = vdwg.mxu0
    %1167 = vst [vmem:[#allocation4] sm:$0x3] %v1162
    %v1168 = vld [vmem:[%s3] sm:$0x3]
    %v1169 = vpack.c.bf16 %v1168, %v1168
    %v1170 = vld [vmem:[%s5] sm:$0xf]
    %v1171 = vld [vmem:[%s5 + $0x4] sm:$0xf]
    %v1172 = vld [vmem:[%s5 + $0x8] sm:$0xf]
    %v1173 = vld [vmem:[%s5 + $0xc] sm:$0xf]
    %v1174 = vld [vmem:[%s5 + $0x10] sm:$0xf]
    %v1175 = vld [vmem:[%s5 + $0x14] sm:$0xf]
    %v1176 = vld [vmem:[%s5 + $0x18] sm:$0xf]
    %v1177 = vld [vmem:[%s5 + $0x1c] sm:$0xf]
    %v1178 = vld [vmem:[%s5 + $0x20] sm:$0xf]
    %v1179 = vld [vmem:[%s5 + $0x24] sm:$0xf]
    %v1180 = vld [vmem:[%s5 + $0x28] sm:$0xf]
    %v1181 = vld [vmem:[%s5 + $0x2c] sm:$0xf]
    %v1182 = vld [vmem:[%s5 + $0x30] sm:$0xf]
    %v1183 = vld [vmem:[%s5 + $0x34] sm:$0xf]
    %v1184 = vld [vmem:[%s5 + $0x38] sm:$0xf]
    %v1185 = vld [vmem:[%s5 + $0x3c] sm:$0xf]
    %v1186 = vld [vmem:[%s7] sm:$0x1]
    %v1188 = vlaneseq
    %v1189 = vshrl.u32 %v1188, 7
    %v1190 = vsub.s32 0, %v1189
    %v1191 = vrot.slane %v1186, %v1190
    %v1209 = vunpack.c.l.b16 %v1170
    %v1210 = vunpack.c.l.b16 %v1171
    %v1211 = vunpack.c.l.b16 %v1172
    %v1212 = vunpack.c.l.b16 %v1173
    %v1213 = vunpack.c.l.b16 %v1174
    %v1214 = vunpack.c.l.b16 %v1175
    %v1215 = vunpack.c.l.b16 %v1176
    %v1216 = vunpack.c.l.b16 %v1177
    %v1217 = vunpack.c.l.b16 %v1178
    %v1218 = vunpack.c.l.b16 %v1179
    %v1219 = vunpack.c.l.b16 %v1180
    %v1220 = vunpack.c.l.b16 %v1181
    %v1221 = vunpack.c.l.b16 %v1182
    %v1222 = vunpack.c.l.b16 %v1183
    %v1223 = vunpack.c.l.b16 %v1184
    %v1224 = vunpack.c.l.b16 %v1185
    %v1225 = vpack.c.b16 %v1210, %v1209
    %v1226 = vpack.c.b16 %v1212, %v1211
    %v1227 = vpack.c.b16 %v1214, %v1213
    %v1228 = vpack.c.b16 %v1216, %v1215
    %v1229 = vpack.c.b16 %v1218, %v1217
    %v1230 = vpack.c.b16 %v1220, %v1219
    %v1231 = vpack.c.b16 %v1222, %v1221
    %v1232 = vpack.c.b16 %v1224, %v1223
    %1241 = vmatprep.subr.bf16.mxu0 0
    %1242 = vmatpush1.bf16.msra.mxu0 %v1232
    %1243 = vmatprep.subr.bf16.mxu0 0
    %1244 = vmatpush1.bf16.msra.mxu0 %v1231
    %1245 = vmatprep.subr.bf16.mxu0 0
    %1246 = vmatpush1.bf16.msra.mxu0 %v1230
    %1247 = vmatprep.subr.bf16.mxu0 0
    %1248 = vmatpush1.bf16.msra.mxu0 %v1229
    %1249 = vmatprep.subr.bf16.mxu0 0
    %1250 = vmatpush1.bf16.msra.mxu0 %v1228
    %1251 = vmatprep.subr.bf16.mxu0 0
    %1252 = vmatpush1.bf16.msra.mxu0 %v1227
    %1253 = vmatprep.subr.bf16.mxu0 0
    %1254 = vmatpush1.bf16.msra.mxu0 %v1226
    %1255 = vmatprep.subr.bf16.mxu0 0
    %1256 = vmatpush1.bf16.msra.mxu0 %v1225
    %1257 = vmatprep.subr.bf16.mxu0 0
    %1258 = vmatpush2.bf16.msra.mxu0 0
    %1259 = vmatprep.subr.bf16.mxu0 0
    %1260 = vmatpush2.bf16.msra.mxu0 0
    %1261 = vmatprep.subr.bf16.mxu0 0
    %1262 = vmatpush2.bf16.msra.mxu0 0
    %1263 = vmatprep.subr.bf16.mxu0 0
    %1264 = vmatpush2.bf16.msra.mxu0 0
    %1265 = vmatprep.subr.bf16.mxu0 0
    %1266 = vmatpush2.bf16.msra.mxu0 0
    %1267 = vmatprep.subr.bf16.mxu0 0
    %1268 = vmatpush2.bf16.msra.mxu0 0
    %1269 = vmatprep.subr.bf16.mxu0 0
    %1270 = vmatpush2.bf16.msra.mxu0 0
    %1271 = vmatprep.subr.bf16.mxu0 0
    %1272 = vmatpush2.bf16.msra.mxu0 0
    %1273 = vmatprep.mubr.bf16.mxu0 0
    %1274 = vmatmul.mubr.bf16.gmra.mxu0 %v1169
    %v1275 = vpop.f32.mrf.mxu0
    %v1276 = vadd.f32 %v1191, %v1275
    %v1277 = vpop.f32.mrf.mxu0
    %v1278 = vpop.f32.mrf.mxu0
    %v1279 = vpop.f32.mrf.mxu0
    %1280 = vdwg.mxu0
    %v1281 = vpack.c.bf16 %v1276, %v1276
    %v1282 = vld [vmem:[%s9] sm:$0xf]
    %v1283 = vld [vmem:[%s9 + $0x4] sm:$0xf]
    %v1284 = vld [vmem:[%s9 + $0x8] sm:$0xf]
    %v1285 = vld [vmem:[%s9 + $0xc] sm:$0xf]
    %v1286 = vld [vmem:[%s9 + $0x10] sm:$0xf]
    %v1287 = vld [vmem:[%s9 + $0x14] sm:$0xf]
    %v1288 = vld [vmem:[%s9 + $0x18] sm:$0xf]
    %v1289 = vld [vmem:[%s9 + $0x1c] sm:$0xf]
    %v1290 = vld [vmem:[%s9 + $0x20] sm:$0xf]
    %v1291 = vld [vmem:[%s9 + $0x24] sm:$0xf]
    %v1292 = vld [vmem:[%s9 + $0x28] sm:$0xf]
    %v1293 = vld [vmem:[%s9 + $0x2c] sm:$0xf]
    %v1294 = vld [vmem:[%s9 + $0x30] sm:$0xf]
    %v1295 = vld [vmem:[%s9 + $0x34] sm:$0xf]
    %v1296 = vld [vmem:[%s9 + $0x38] sm:$0xf]
    %v1297 = vld [vmem:[%s9 + $0x3c] sm:$0xf]
    %v1298 = vld [vmem:[%s11] sm:$0x1]
    %v1300 = vlaneseq
    %v1301 = vshrl.u32 %v1300, 7
    %v1302 = vsub.s32 0, %v1301
    %v1303 = vrot.slane %v1298, %v1302
    %v1321 = vunpack.c.l.b16 %v1282
    %v1322 = vunpack.c.l.b16 %v1283
    %v1323 = vunpack.c.l.b16 %v1284
    %v1324 = vunpack.c.l.b16 %v1285
    %v1325 = vunpack.c.l.b16 %v1286
    %v1326 = vunpack.c.l.b16 %v1287
    %v1327 = vunpack.c.l.b16 %v1288
    %v1328 = vunpack.c.l.b16 %v1289
    %v1329 = vunpack.c.l.b16 %v1290
    %v1330 = vunpack.c.l.b16 %v1291
    %v1331 = vunpack.c.l.b16 %v1292
    %v1332 = vunpack.c.l.b16 %v1293
    %v1333 = vunpack.c.l.b16 %v1294
    %v1334 = vunpack.c.l.b16 %v1295
    %v1335 = vunpack.c.l.b16 %v1296
    %v1336 = vunpack.c.l.b16 %v1297
    %v1337 = vpack.c.b16 %v1322, %v1321
    %v1338 = vpack.c.b16 %v1324, %v1323
    %v1339 = vpack.c.b16 %v1326, %v1325
    %v1340 = vpack.c.b16 %v1328, %v1327
    %v1341 = vpack.c.b16 %v1330, %v1329
    %v1342 = vpack.c.b16 %v1332, %v1331
    %v1343 = vpack.c.b16 %v1334, %v1333
    %v1344 = vpack.c.b16 %v1336, %v1335
    %1353 = vmatprep.subr.bf16.mxu0 0
    %1354 = vmatpush1.bf16.msra.mxu0 %v1344
    %1355 = vmatprep.subr.bf16.mxu0 0
    %1356 = vmatpush1.bf16.msra.mxu0 %v1343
    %1357 = vmatprep.subr.bf16.mxu0 0
    %1358 = vmatpush1.bf16.msra.mxu0 %v1342
    %1359 = vmatprep.subr.bf16.mxu0 0
    %1360 = vmatpush1.bf16.msra.mxu0 %v1341
    %1361 = vmatprep.subr.bf16.mxu0 0
    %1362 = vmatpush1.bf16.msra.mxu0 %v1340
    %1363 = vmatprep.subr.bf16.mxu0 0
    %1364 = vmatpush1.bf16.msra.mxu0 %v1339
    %1365 = vmatprep.subr.bf16.mxu0 0
    %1366 = vmatpush1.bf16.msra.mxu0 %v1338
    %1367 = vmatprep.subr.bf16.mxu0 0
    %1368 = vmatpush1.bf16.msra.mxu0 %v1337
    %1369 = vmatprep.subr.bf16.mxu0 0
    %1370 = vmatpush2.bf16.msra.mxu0 0
    %1371 = vmatprep.subr.bf16.mxu0 0
    %1372 = vmatpush2.bf16.msra.mxu0 0
    %1373 = vmatprep.subr.bf16.mxu0 0
    %1374 = vmatpush2.bf16.msra.mxu0 0
    %1375 = vmatprep.subr.bf16.mxu0 0
    %1376 = vmatpush2.bf16.msra.mxu0 0
    %1377 = vmatprep.subr.bf16.mxu0 0
    %1378 = vmatpush2.bf16.msra.mxu0 0
    %1379 = vmatprep.subr.bf16.mxu0 0
    %1380 = vmatpush2.bf16.msra.mxu0 0
    %1381 = vmatprep.subr.bf16.mxu0 0
    %1382 = vmatpush2.bf16.msra.mxu0 0
    %1383 = vmatprep.subr.bf16.mxu0 0
    %1384 = vmatpush2.bf16.msra.mxu0 0
    %1385 = vmatprep.mubr.bf16.mxu0 0
    %1386 = vmatmul.mubr.bf16.gmra.mxu0 %v1281
    %v1387 = vpop.f32.mrf.mxu0
    %v1388 = vadd.f32 %v1303, %v1387
    %v1389 = vpop.f32.mrf.mxu0
    %v1390 = vpop.f32.mrf.mxu0
    %v1391 = vpop.f32.mrf.mxu0
    %1392 = vdwg.mxu0
    %v1393 = vsel %vm365, %v1388, 0.0
    %v1394 = vrot.slane %v1393, 4
    %v1395 = vadd.f32 %v1393, %v1394
    %v1396 = vrot.slane %v1395, 2
    %v1397 = vadd.f32 %v1395, %v1396
    %v1398 = vrot.slane %v1397, 1
    %v1399 = vadd.f32 %v1397, %v1398
    %v1400 = vmul.f32 %v1399, %v373
    %v1401 = vmul.f32 %v1388, %v1388
    %v1402 = vsel %vm365, %v1401, 0.0
    %v1403 = vrot.slane %v1402, 4
    %v1404 = vadd.f32 %v1402, %v1403
    %v1405 = vrot.slane %v1404, 2
    %v1406 = vadd.f32 %v1404, %v1405
    %v1407 = vrot.slane %v1406, 1
    %v1408 = vadd.f32 %v1406, %v1407
    %v1409 = vmul.f32 %v1408, %v373
    %v1410 = vmul.f32 %v1400, %v1400
    %v1411 = vsub.f32 %v1409, %v1410
    %v1412 = vmax.f32 %v1411, 0.0
    %v1413 = vld [vmem:[%s13] sm:$0x1]
    %v1414 = vadd.f32 %v1412, 1e-05
    %v1415 = vrsqrt.pop %v1414
    %v1416 = vmul.f32 %v1413, %v1415
    %v1417 = vld [vmem:[%s15] sm:$0x1]
    %v1418 = vmul.f32 %v1400, %v1416
    %v1419 = vsub.f32 %v1417, %v1418
    %v1421 = vlaneseq
    %v1422 = vshrl.u32 %v1421, 7
    %v1423 = vsub.s32 0, %v1422
    %v1424 = vrot.slane %v1416, %v1423
    %v1426 = vmul.f32 %v1388, %v1424
    %v1428 = vlaneseq
    %v1429 = vshrl.u32 %v1428, 7
    %v1430 = vsub.s32 0, %v1429
    %v1431 = vrot.slane %v1419, %v1430
    %v1433 = vadd.f32 %v1426, %v1431
    %v1434 = vmax.f32 %v1433, 0.0
    %v1435 = vpack.c.bf16 %v1434, %v1434
    %v1436 = vld [vmem:[%s17] sm:$0xf]
    %v1437 = vld [vmem:[%s17 + $0x4] sm:$0xf]
    %v1438 = vld [vmem:[%s17 + $0x8] sm:$0xf]
    %v1439 = vld [vmem:[%s17 + $0xc] sm:$0xf]
    %v1440 = vld [vmem:[%s17 + $0x10] sm:$0xf]
    %v1441 = vld [vmem:[%s17 + $0x14] sm:$0xf]
    %v1442 = vld [vmem:[%s17 + $0x18] sm:$0xf]
    %v1443 = vld [vmem:[%s17 + $0x1c] sm:$0xf]
    %v1444 = vld [vmem:[%s17 + $0x20] sm:$0xf]
    %v1445 = vld [vmem:[%s17 + $0x24] sm:$0xf]
    %v1446 = vld [vmem:[%s17 + $0x28] sm:$0xf]
    %v1447 = vld [vmem:[%s17 + $0x2c] sm:$0xf]
    %v1448 = vld [vmem:[%s17 + $0x30] sm:$0xf]
    %v1449 = vld [vmem:[%s17 + $0x34] sm:$0xf]
    %v1450 = vld [vmem:[%s17 + $0x38] sm:$0xf]
    %v1451 = vld [vmem:[%s17 + $0x3c] sm:$0xf]
    %v1452 = vld [vmem:[%s19] sm:$0x1]
    %v1454 = vlaneseq
    %v1455 = vshrl.u32 %v1454, 7
    %v1456 = vsub.s32 0, %v1455
    %v1457 = vrot.slane %v1452, %v1456
    %v1475 = vunpack.c.l.b16 %v1436
    %v1476 = vunpack.c.l.b16 %v1437
    %v1477 = vunpack.c.l.b16 %v1438
    %v1478 = vunpack.c.l.b16 %v1439
    %v1479 = vunpack.c.l.b16 %v1440
    %v1480 = vunpack.c.l.b16 %v1441
    %v1481 = vunpack.c.l.b16 %v1442
    %v1482 = vunpack.c.l.b16 %v1443
    %v1483 = vunpack.c.l.b16 %v1444
    %v1484 = vunpack.c.l.b16 %v1445
    %v1485 = vunpack.c.l.b16 %v1446
    %v1486 = vunpack.c.l.b16 %v1447
    %v1487 = vunpack.c.l.b16 %v1448
    %v1488 = vunpack.c.l.b16 %v1449
    %v1489 = vunpack.c.l.b16 %v1450
    %v1490 = vunpack.c.l.b16 %v1451
    %v1491 = vpack.c.b16 %v1476, %v1475
    %v1492 = vpack.c.b16 %v1478, %v1477
    %v1493 = vpack.c.b16 %v1480, %v1479
    %v1494 = vpack.c.b16 %v1482, %v1481
    %v1495 = vpack.c.b16 %v1484, %v1483
    %v1496 = vpack.c.b16 %v1486, %v1485
    %v1497 = vpack.c.b16 %v1488, %v1487
    %v1498 = vpack.c.b16 %v1490, %v1489
    %1507 = vmatprep.subr.bf16.mxu0 0
    %1508 = vmatpush1.bf16.msra.mxu0 %v1498
    %1509 = vmatprep.subr.bf16.mxu0 0
    %1510 = vmatpush1.bf16.msra.mxu0 %v1497
    %1511 = vmatprep.subr.bf16.mxu0 0
    %1512 = vmatpush1.bf16.msra.mxu0 %v1496
    %1513 = vmatprep.subr.bf16.mxu0 0
    %1514 = vmatpush1.bf16.msra.mxu0 %v1495
    %1515 = vmatprep.subr.bf16.mxu0 0
    %1516 = vmatpush1.bf16.msra.mxu0 %v1494
    %1517 = vmatprep.subr.bf16.mxu0 0
    %1518 = vmatpush1.bf16.msra.mxu0 %v1493
    %1519 = vmatprep.subr.bf16.mxu0 0
    %1520 = vmatpush1.bf16.msra.mxu0 %v1492
    %1521 = vmatprep.subr.bf16.mxu0 0
    %1522 = vmatpush1.bf16.msra.mxu0 %v1491
    %1523 = vmatprep.subr.bf16.mxu0 0
    %1524 = vmatpush2.bf16.msra.mxu0 0
    %1525 = vmatprep.subr.bf16.mxu0 0
    %1526 = vmatpush2.bf16.msra.mxu0 0
    %1527 = vmatprep.subr.bf16.mxu0 0
    %1528 = vmatpush2.bf16.msra.mxu0 0
    %1529 = vmatprep.subr.bf16.mxu0 0
    %1530 = vmatpush2.bf16.msra.mxu0 0
    %1531 = vmatprep.subr.bf16.mxu0 0
    %1532 = vmatpush2.bf16.msra.mxu0 0
    %1533 = vmatprep.subr.bf16.mxu0 0
    %1534 = vmatpush2.bf16.msra.mxu0 0
    %1535 = vmatprep.subr.bf16.mxu0 0
    %1536 = vmatpush2.bf16.msra.mxu0 0
    %1537 = vmatprep.subr.bf16.mxu0 0
    %1538 = vmatpush2.bf16.msra.mxu0 0
    %1539 = vmatprep.mubr.bf16.mxu0 0
    %1540 = vmatmul.mubr.bf16.gmra.mxu0 %v1435
    %v1541 = vpop.f32.mrf.mxu0
    %v1542 = vadd.f32 %v1457, %v1541
    %v1543 = vpop.f32.mrf.mxu0
    %v1544 = vpop.f32.mrf.mxu0
    %v1545 = vpop.f32.mrf.mxu0
    %1546 = vdwg.mxu0
    %v1547 = vpack.c.bf16 %v1542, %v1542
    %v1548 = vld [vmem:[%s21] sm:$0xf]
    %v1549 = vld [vmem:[%s21 + $0x4] sm:$0xf]
    %v1550 = vld [vmem:[%s21 + $0x8] sm:$0xf]
    %v1551 = vld [vmem:[%s21 + $0xc] sm:$0xf]
    %v1552 = vld [vmem:[%s21 + $0x10] sm:$0xf]
    %v1553 = vld [vmem:[%s21 + $0x14] sm:$0xf]
    %v1554 = vld [vmem:[%s21 + $0x18] sm:$0xf]
    %v1555 = vld [vmem:[%s21 + $0x1c] sm:$0xf]
    %v1556 = vld [vmem:[%s21 + $0x20] sm:$0xf]
    %v1557 = vld [vmem:[%s21 + $0x24] sm:$0xf]
    %v1558 = vld [vmem:[%s21 + $0x28] sm:$0xf]
    %v1559 = vld [vmem:[%s21 + $0x2c] sm:$0xf]
    %v1560 = vld [vmem:[%s21 + $0x30] sm:$0xf]
    %v1561 = vld [vmem:[%s21 + $0x34] sm:$0xf]
    %v1562 = vld [vmem:[%s21 + $0x38] sm:$0xf]
    %v1563 = vld [vmem:[%s21 + $0x3c] sm:$0xf]
    %v1564 = vld [vmem:[%s23] sm:$0x1]
    %v1566 = vlaneseq
    %v1567 = vshrl.u32 %v1566, 7
    %v1568 = vsub.s32 0, %v1567
    %v1569 = vrot.slane %v1564, %v1568
    %v1587 = vunpack.c.l.b16 %v1548
    %v1588 = vunpack.c.l.b16 %v1549
    %v1589 = vunpack.c.l.b16 %v1550
    %v1590 = vunpack.c.l.b16 %v1551
    %v1591 = vunpack.c.l.b16 %v1552
    %v1592 = vunpack.c.l.b16 %v1553
    %v1593 = vunpack.c.l.b16 %v1554
    %v1594 = vunpack.c.l.b16 %v1555
    %v1595 = vunpack.c.l.b16 %v1556
    %v1596 = vunpack.c.l.b16 %v1557
    %v1597 = vunpack.c.l.b16 %v1558
    %v1598 = vunpack.c.l.b16 %v1559
    %v1599 = vunpack.c.l.b16 %v1560
    %v1600 = vunpack.c.l.b16 %v1561
    %v1601 = vunpack.c.l.b16 %v1562
    %v1602 = vunpack.c.l.b16 %v1563
    %v1603 = vpack.c.b16 %v1588, %v1587
    %v1604 = vpack.c.b16 %v1590, %v1589
    %v1605 = vpack.c.b16 %v1592, %v1591
    %v1606 = vpack.c.b16 %v1594, %v1593
    %v1607 = vpack.c.b16 %v1596, %v1595
    %v1608 = vpack.c.b16 %v1598, %v1597
    %v1609 = vpack.c.b16 %v1600, %v1599
    %v1610 = vpack.c.b16 %v1602, %v1601
    %1619 = vmatprep.subr.bf16.mxu0 0
    %1620 = vmatpush1.bf16.msra.mxu0 %v1610
    %1621 = vmatprep.subr.bf16.mxu0 0
    %1622 = vmatpush1.bf16.msra.mxu0 %v1609
    %1623 = vmatprep.subr.bf16.mxu0 0
    %1624 = vmatpush1.bf16.msra.mxu0 %v1608
    %1625 = vmatprep.subr.bf16.mxu0 0
    %1626 = vmatpush1.bf16.msra.mxu0 %v1607
    %1627 = vmatprep.subr.bf16.mxu0 0
    %1628 = vmatpush1.bf16.msra.mxu0 %v1606
    %1629 = vmatprep.subr.bf16.mxu0 0
    %1630 = vmatpush1.bf16.msra.mxu0 %v1605
    %1631 = vmatprep.subr.bf16.mxu0 0
    %1632 = vmatpush1.bf16.msra.mxu0 %v1604
    %1633 = vmatprep.subr.bf16.mxu0 0
    %1634 = vmatpush1.bf16.msra.mxu0 %v1603
    %1635 = vmatprep.subr.bf16.mxu0 0
    %1636 = vmatpush2.bf16.msra.mxu0 0
    %1637 = vmatprep.subr.bf16.mxu0 0
    %1638 = vmatpush2.bf16.msra.mxu0 0
    %1639 = vmatprep.subr.bf16.mxu0 0
    %1640 = vmatpush2.bf16.msra.mxu0 0
    %1641 = vmatprep.subr.bf16.mxu0 0
    %1642 = vmatpush2.bf16.msra.mxu0 0
    %1643 = vmatprep.subr.bf16.mxu0 0
    %1644 = vmatpush2.bf16.msra.mxu0 0
    %1645 = vmatprep.subr.bf16.mxu0 0
    %1646 = vmatpush2.bf16.msra.mxu0 0
    %1647 = vmatprep.subr.bf16.mxu0 0
    %1648 = vmatpush2.bf16.msra.mxu0 0
    %1649 = vmatprep.subr.bf16.mxu0 0
    %1650 = vmatpush2.bf16.msra.mxu0 0
    %1651 = vmatprep.mubr.bf16.mxu0 0
    %1652 = vmatmul.mubr.bf16.gmra.mxu0 %v1547
    %v1653 = vpop.f32.mrf.mxu0
    %v1654 = vadd.f32 %v1569, %v1653
    %v1655 = vpop.f32.mrf.mxu0
    %v1656 = vpop.f32.mrf.mxu0
    %v1657 = vpop.f32.mrf.mxu0
    %1658 = vdwg.mxu0
    %v1659 = vsel %vm365, %v1654, 0.0
    %v1660 = vrot.slane %v1659, 4
    %v1661 = vadd.f32 %v1659, %v1660
    %v1662 = vrot.slane %v1661, 2
    %v1663 = vadd.f32 %v1661, %v1662
    %v1664 = vrot.slane %v1663, 1
    %v1665 = vadd.f32 %v1663, %v1664
    %v1666 = vmul.f32 %v1665, %v373
    %v1667 = vmul.f32 %v1654, %v1654
    %v1668 = vsel %vm365, %v1667, 0.0
    %v1669 = vrot.slane %v1668, 4
    %v1670 = vadd.f32 %v1668, %v1669
    %v1671 = vrot.slane %v1670, 2
    %v1672 = vadd.f32 %v1670, %v1671
    %v1673 = vrot.slane %v1672, 1
    %v1674 = vadd.f32 %v1672, %v1673
    %v1675 = vmul.f32 %v1674, %v373
    %v1676 = vmul.f32 %v1666, %v1666
    %v1677 = vsub.f32 %v1675, %v1676
    %v1678 = vmax.f32 %v1677, 0.0
    %v1679 = vld [vmem:[%s25] sm:$0x1]
    %v1680 = vadd.f32 %v1678, 1e-05
    %v1681 = vrsqrt.pop %v1680
    %v1682 = vmul.f32 %v1679, %v1681
    %v1683 = vld [vmem:[%s27] sm:$0x1]
    %v1684 = vmul.f32 %v1666, %v1682
    %v1685 = vsub.f32 %v1683, %v1684
    %v1687 = vlaneseq
    %v1688 = vshrl.u32 %v1687, 7
    %v1689 = vsub.s32 0, %v1688
    %v1690 = vrot.slane %v1682, %v1689
    %v1692 = vmul.f32 %v1654, %v1690
    %v1694 = vlaneseq
    %v1695 = vshrl.u32 %v1694, 7
    %v1696 = vsub.s32 0, %v1695
    %v1697 = vrot.slane %v1685, %v1696
    %v1699 = vadd.f32 %v1692, %v1697
    %v1700 = vmax.f32 %v1699, 0.0
    %v1701 = vpack.c.bf16 %v1700, %v1700
    %v1702 = vld [vmem:[%s29] sm:$0xf]
    %v1703 = vld [vmem:[%s29 + $0x4] sm:$0xf]
    %v1704 = vld [vmem:[%s29 + $0x8] sm:$0xf]
    %v1705 = vld [vmem:[%s29 + $0xc] sm:$0xf]
    %v1706 = vld [vmem:[%s29 + $0x10] sm:$0xf]
    %v1707 = vld [vmem:[%s29 + $0x14] sm:$0xf]
    %v1708 = vld [vmem:[%s29 + $0x18] sm:$0xf]
    %v1709 = vld [vmem:[%s29 + $0x1c] sm:$0xf]
    %v1710 = vld [vmem:[%s29 + $0x20] sm:$0xf]
    %v1711 = vld [vmem:[%s29 + $0x24] sm:$0xf]
    %v1712 = vld [vmem:[%s29 + $0x28] sm:$0xf]
    %v1713 = vld [vmem:[%s29 + $0x2c] sm:$0xf]
    %v1714 = vld [vmem:[%s29 + $0x30] sm:$0xf]
    %v1715 = vld [vmem:[%s29 + $0x34] sm:$0xf]
    %v1716 = vld [vmem:[%s29 + $0x38] sm:$0xf]
    %v1717 = vld [vmem:[%s29 + $0x3c] sm:$0xf]
    %v1718 = vld [vmem:[%s31] sm:$0x1]
    %v1720 = vlaneseq
    %v1721 = vshrl.u32 %v1720, 7
    %v1722 = vsub.s32 0, %v1721
    %v1723 = vrot.slane %v1718, %v1722
    %v1741 = vunpack.c.l.b16 %v1702
    %v1742 = vunpack.c.l.b16 %v1703
    %v1743 = vunpack.c.l.b16 %v1704
    %v1744 = vunpack.c.l.b16 %v1705
    %v1745 = vunpack.c.l.b16 %v1706
    %v1746 = vunpack.c.l.b16 %v1707
    %v1747 = vunpack.c.l.b16 %v1708
    %v1748 = vunpack.c.l.b16 %v1709
    %v1749 = vunpack.c.l.b16 %v1710
    %v1750 = vunpack.c.l.b16 %v1711
    %v1751 = vunpack.c.l.b16 %v1712
    %v1752 = vunpack.c.l.b16 %v1713
    %v1753 = vunpack.c.l.b16 %v1714
    %v1754 = vunpack.c.l.b16 %v1715
    %v1755 = vunpack.c.l.b16 %v1716
    %v1756 = vunpack.c.l.b16 %v1717
    %v1757 = vpack.c.b16 %v1742, %v1741
    %v1758 = vpack.c.b16 %v1744, %v1743
    %v1759 = vpack.c.b16 %v1746, %v1745
    %v1760 = vpack.c.b16 %v1748, %v1747
    %v1761 = vpack.c.b16 %v1750, %v1749
    %v1762 = vpack.c.b16 %v1752, %v1751
    %v1763 = vpack.c.b16 %v1754, %v1753
    %v1764 = vpack.c.b16 %v1756, %v1755
    %1773 = vmatprep.subr.bf16.mxu0 0
    %1774 = vmatpush1.bf16.msra.mxu0 %v1764
    %1775 = vmatprep.subr.bf16.mxu0 0
    %1776 = vmatpush1.bf16.msra.mxu0 %v1763
    %1777 = vmatprep.subr.bf16.mxu0 0
    %1778 = vmatpush1.bf16.msra.mxu0 %v1762
    %1779 = vmatprep.subr.bf16.mxu0 0
    %1780 = vmatpush1.bf16.msra.mxu0 %v1761
    %1781 = vmatprep.subr.bf16.mxu0 0
    %1782 = vmatpush1.bf16.msra.mxu0 %v1760
    %1783 = vmatprep.subr.bf16.mxu0 0
    %1784 = vmatpush1.bf16.msra.mxu0 %v1759
    %1785 = vmatprep.subr.bf16.mxu0 0
    %1786 = vmatpush1.bf16.msra.mxu0 %v1758
    %1787 = vmatprep.subr.bf16.mxu0 0
    %1788 = vmatpush1.bf16.msra.mxu0 %v1757
    %1789 = vmatprep.subr.bf16.mxu0 0
    %1790 = vmatpush2.bf16.msra.mxu0 0
    %1791 = vmatprep.subr.bf16.mxu0 0
    %1792 = vmatpush2.bf16.msra.mxu0 0
    %1793 = vmatprep.subr.bf16.mxu0 0
    %1794 = vmatpush2.bf16.msra.mxu0 0
    %1795 = vmatprep.subr.bf16.mxu0 0
    %1796 = vmatpush2.bf16.msra.mxu0 0
    %1797 = vmatprep.subr.bf16.mxu0 0
    %1798 = vmatpush2.bf16.msra.mxu0 0
    %1799 = vmatprep.subr.bf16.mxu0 0
    %1800 = vmatpush2.bf16.msra.mxu0 0
    %1801 = vmatprep.subr.bf16.mxu0 0
    %1802 = vmatpush2.bf16.msra.mxu0 0
    %1803 = vmatprep.subr.bf16.mxu0 0
    %1804 = vmatpush2.bf16.msra.mxu0 0
    %1805 = vmatprep.mubr.bf16.mxu0 0
    %1806 = vmatmul.mubr.bf16.gmra.mxu0 %v1701
    %v1807 = vpop.f32.mrf.mxu0
    %v1808 = vadd.f32 %v1723, %v1807
    %v1809 = vpop.f32.mrf.mxu0
    %v1810 = vpop.f32.mrf.mxu0
    %v1811 = vpop.f32.mrf.mxu0
    %1812 = vdwg.mxu0
    %s1813 = scalar_lea.vmem [#allocation2], 2
    %1814 = vst [vmem:[%s1813] sm:$0x3] %v1808
    %v1815 = vld [vmem:[%s1] sm:$0x3]
    %v1816 = vpack.c.bf16 %v1815, %v1815
    %v1817 = vld [vmem:[%s49] sm:$0xf]
    %v1818 = vld [vmem:[%s49 + $0x4] sm:$0xf]
    %v1819 = vld [vmem:[%s49 + $0x8] sm:$0xf]
    %v1820 = vld [vmem:[%s49 + $0xc] sm:$0xf]
    %v1821 = vld [vmem:[%s49 + $0x10] sm:$0xf]
    %v1822 = vld [vmem:[%s49 + $0x14] sm:$0xf]
    %v1823 = vld [vmem:[%s49 + $0x18] sm:$0xf]
    %v1824 = vld [vmem:[%s49 + $0x1c] sm:$0xf]
    %v1825 = vld [vmem:[%s49 + $0x20] sm:$0xf]
    %v1826 = vld [vmem:[%s49 + $0x24] sm:$0xf]
    %v1827 = vld [vmem:[%s49 + $0x28] sm:$0xf]
    %v1828 = vld [vmem:[%s49 + $0x2c] sm:$0xf]
    %v1829 = vld [vmem:[%s49 + $0x30] sm:$0xf]
    %v1830 = vld [vmem:[%s49 + $0x34] sm:$0xf]
    %v1831 = vld [vmem:[%s49 + $0x38] sm:$0xf]
    %v1832 = vld [vmem:[%s49 + $0x3c] sm:$0xf]
    %v1833 = vld [vmem:[%s51] sm:$0x1]
    %v1835 = vlaneseq
    %v1836 = vshrl.u32 %v1835, 7
    %v1837 = vsub.s32 0, %v1836
    %v1838 = vrot.slane %v1833, %v1837
    %v1856 = vunpack.c.l.b16 %v1817
    %v1857 = vunpack.c.l.b16 %v1818
    %v1858 = vunpack.c.l.b16 %v1819
    %v1859 = vunpack.c.l.b16 %v1820
    %v1860 = vunpack.c.l.b16 %v1821
    %v1861 = vunpack.c.l.b16 %v1822
    %v1862 = vunpack.c.l.b16 %v1823
    %v1863 = vunpack.c.l.b16 %v1824
    %v1864 = vunpack.c.l.b16 %v1825
    %v1865 = vunpack.c.l.b16 %v1826
    %v1866 = vunpack.c.l.b16 %v1827
    %v1867 = vunpack.c.l.b16 %v1828
    %v1868 = vunpack.c.l.b16 %v1829
    %v1869 = vunpack.c.l.b16 %v1830
    %v1870 = vunpack.c.l.b16 %v1831
    %v1871 = vunpack.c.l.b16 %v1832
    %v1872 = vpack.c.b16 %v1857, %v1856
    %v1873 = vpack.c.b16 %v1859, %v1858
    %v1874 = vpack.c.b16 %v1861, %v1860
    %v1875 = vpack.c.b16 %v1863, %v1862
    %v1876 = vpack.c.b16 %v1865, %v1864
    %v1877 = vpack.c.b16 %v1867, %v1866
    %v1878 = vpack.c.b16 %v1869, %v1868
    %v1879 = vpack.c.b16 %v1871, %v1870
    %1888 = vmatprep.subr.bf16.mxu0 0
    %1889 = vmatpush1.bf16.msra.mxu0 %v1879
    %1890 = vmatprep.subr.bf16.mxu0 0
    %1891 = vmatpush1.bf16.msra.mxu0 %v1878
    %1892 = vmatprep.subr.bf16.mxu0 0
    %1893 = vmatpush1.bf16.msra.mxu0 %v1877
    %1894 = vmatprep.subr.bf16.mxu0 0
    %1895 = vmatpush1.bf16.msra.mxu0 %v1876
    %1896 = vmatprep.subr.bf16.mxu0 0
    %1897 = vmatpush1.bf16.msra.mxu0 %v1875
    %1898 = vmatprep.subr.bf16.mxu0 0
    %1899 = vmatpush1.bf16.msra.mxu0 %v1874
    %1900 = vmatprep.subr.bf16.mxu0 0
    %1901 = vmatpush1.bf16.msra.mxu0 %v1873
    %1902 = vmatprep.subr.bf16.mxu0 0
    %1903 = vmatpush1.bf16.msra.mxu0 %v1872
    %1904 = vmatprep.subr.bf16.mxu0 0
    %1905 = vmatpush2.bf16.msra.mxu0 0
    %1906 = vmatprep.subr.bf16.mxu0 0
    %1907 = vmatpush2.bf16.msra.mxu0 0
    %1908 = vmatprep.subr.bf16.mxu0 0
    %1909 = vmatpush2.bf16.msra.mxu0 0
    %1910 = vmatprep.subr.bf16.mxu0 0
    %1911 = vmatpush2.bf16.msra.mxu0 0
    %1912 = vmatprep.subr.bf16.mxu0 0
    %1913 = vmatpush2.bf16.msra.mxu0 0
    %1914 = vmatprep.subr.bf16.mxu0 0
    %1915 = vmatpush2.bf16.msra.mxu0 0
    %1916 = vmatprep.subr.bf16.mxu0 0
    %1917 = vmatpush2.bf16.msra.mxu0 0
    %1918 = vmatprep.subr.bf16.mxu0 0
    %1919 = vmatpush2.bf16.msra.mxu0 0
    %1920 = vmatprep.mubr.bf16.mxu0 0
    %1921 = vmatmul.mubr.bf16.gmra.mxu0 %v1816
    %v1922 = vpop.f32.mrf.mxu0
    %v1923 = vadd.f32 %v1838, %v1922
    %v1924 = vpop.f32.mrf.mxu0
    %v1925 = vpop.f32.mrf.mxu0
    %v1926 = vpop.f32.mrf.mxu0
    %1927 = vdwg.mxu0
    %v1928 = vpack.c.bf16 %v1923, %v1923
    %v1929 = vld [vmem:[%s53] sm:$0xf]
    %v1930 = vld [vmem:[%s53 + $0x4] sm:$0xf]
    %v1931 = vld [vmem:[%s53 + $0x8] sm:$0xf]
    %v1932 = vld [vmem:[%s53 + $0xc] sm:$0xf]
    %v1933 = vld [vmem:[%s53 + $0x10] sm:$0xf]
    %v1934 = vld [vmem:[%s53 + $0x14] sm:$0xf]
    %v1935 = vld [vmem:[%s53 + $0x18] sm:$0xf]
    %v1936 = vld [vmem:[%s53 + $0x1c] sm:$0xf]
    %v1937 = vld [vmem:[%s53 + $0x20] sm:$0xf]
    %v1938 = vld [vmem:[%s53 + $0x24] sm:$0xf]
    %v1939 = vld [vmem:[%s53 + $0x28] sm:$0xf]
    %v1940 = vld [vmem:[%s53 + $0x2c] sm:$0xf]
    %v1941 = vld [vmem:[%s53 + $0x30] sm:$0xf]
    %v1942 = vld [vmem:[%s53 + $0x34] sm:$0xf]
    %v1943 = vld [vmem:[%s53 + $0x38] sm:$0xf]
    %v1944 = vld [vmem:[%s53 + $0x3c] sm:$0xf]
    %v1945 = vld [vmem:[%s55] sm:$0x1]
    %v1947 = vlaneseq
    %v1948 = vshrl.u32 %v1947, 7
    %v1949 = vsub.s32 0, %v1948
    %v1950 = vrot.slane %v1945, %v1949
    %v1968 = vunpack.c.l.b16 %v1929
    %v1969 = vunpack.c.l.b16 %v1930
    %v1970 = vunpack.c.l.b16 %v1931
    %v1971 = vunpack.c.l.b16 %v1932
    %v1972 = vunpack.c.l.b16 %v1933
    %v1973 = vunpack.c.l.b16 %v1934
    %v1974 = vunpack.c.l.b16 %v1935
    %v1975 = vunpack.c.l.b16 %v1936
    %v1976 = vunpack.c.l.b16 %v1937
    %v1977 = vunpack.c.l.b16 %v1938
    %v1978 = vunpack.c.l.b16 %v1939
    %v1979 = vunpack.c.l.b16 %v1940
    %v1980 = vunpack.c.l.b16 %v1941
    %v1981 = vunpack.c.l.b16 %v1942
    %v1982 = vunpack.c.l.b16 %v1943
    %v1983 = vunpack.c.l.b16 %v1944
    %v1984 = vpack.c.b16 %v1969, %v1968
    %v1985 = vpack.c.b16 %v1971, %v1970
    %v1986 = vpack.c.b16 %v1973, %v1972
    %v1987 = vpack.c.b16 %v1975, %v1974
    %v1988 = vpack.c.b16 %v1977, %v1976
    %v1989 = vpack.c.b16 %v1979, %v1978
    %v1990 = vpack.c.b16 %v1981, %v1980
    %v1991 = vpack.c.b16 %v1983, %v1982
    %2000 = vmatprep.subr.bf16.mxu0 0
    %2001 = vmatpush1.bf16.msra.mxu0 %v1991
    %2002 = vmatprep.subr.bf16.mxu0 0
    %2003 = vmatpush1.bf16.msra.mxu0 %v1990
    %2004 = vmatprep.subr.bf16.mxu0 0
    %2005 = vmatpush1.bf16.msra.mxu0 %v1989
    %2006 = vmatprep.subr.bf16.mxu0 0
    %2007 = vmatpush1.bf16.msra.mxu0 %v1988
    %2008 = vmatprep.subr.bf16.mxu0 0
    %2009 = vmatpush1.bf16.msra.mxu0 %v1987
    %2010 = vmatprep.subr.bf16.mxu0 0
    %2011 = vmatpush1.bf16.msra.mxu0 %v1986
    %2012 = vmatprep.subr.bf16.mxu0 0
    %2013 = vmatpush1.bf16.msra.mxu0 %v1985
    %2014 = vmatprep.subr.bf16.mxu0 0
    %2015 = vmatpush1.bf16.msra.mxu0 %v1984
    %2016 = vmatprep.subr.bf16.mxu0 0
    %2017 = vmatpush2.bf16.msra.mxu0 0
    %2018 = vmatprep.subr.bf16.mxu0 0
    %2019 = vmatpush2.bf16.msra.mxu0 0
    %2020 = vmatprep.subr.bf16.mxu0 0
    %2021 = vmatpush2.bf16.msra.mxu0 0
    %2022 = vmatprep.subr.bf16.mxu0 0
    %2023 = vmatpush2.bf16.msra.mxu0 0
    %2024 = vmatprep.subr.bf16.mxu0 0
    %2025 = vmatpush2.bf16.msra.mxu0 0
    %2026 = vmatprep.subr.bf16.mxu0 0
    %2027 = vmatpush2.bf16.msra.mxu0 0
    %2028 = vmatprep.subr.bf16.mxu0 0
    %2029 = vmatpush2.bf16.msra.mxu0 0
    %2030 = vmatprep.subr.bf16.mxu0 0
    %2031 = vmatpush2.bf16.msra.mxu0 0
    %2032 = vmatprep.mubr.bf16.mxu0 0
    %2033 = vmatmul.mubr.bf16.gmra.mxu0 %v1928
    %v2034 = vpop.f32.mrf.mxu0
    %v2035 = vadd.f32 %v1950, %v2034
    %v2036 = vpop.f32.mrf.mxu0
    %v2037 = vpop.f32.mrf.mxu0
    %v2038 = vpop.f32.mrf.mxu0
    %2039 = vdwg.mxu0
    %v2040 = vsel %vm365, %v2035, 0.0
    %v2041 = vrot.slane %v2040, 4
    %v2042 = vadd.f32 %v2040, %v2041
    %v2043 = vrot.slane %v2042, 2
    %v2044 = vadd.f32 %v2042, %v2043
    %v2045 = vrot.slane %v2044, 1
    %v2046 = vadd.f32 %v2044, %v2045
    %v2047 = vmul.f32 %v2046, %v373
    %v2048 = vmul.f32 %v2035, %v2035
    %v2049 = vsel %vm365, %v2048, 0.0
    %v2050 = vrot.slane %v2049, 4
    %v2051 = vadd.f32 %v2049, %v2050
    %v2052 = vrot.slane %v2051, 2
    %v2053 = vadd.f32 %v2051, %v2052
    %v2054 = vrot.slane %v2053, 1
    %v2055 = vadd.f32 %v2053, %v2054
    %v2056 = vmul.f32 %v2055, %v373
    %v2057 = vmul.f32 %v2047, %v2047
    %v2058 = vsub.f32 %v2056, %v2057
    %v2059 = vmax.f32 %v2058, 0.0
    %v2060 = vld [vmem:[%s57] sm:$0x1]
    %v2061 = vadd.f32 %v2059, 1e-05
    %v2062 = vrsqrt.pop %v2061
    %v2063 = vmul.f32 %v2060, %v2062
    %v2064 = vld [vmem:[%s59] sm:$0x1]
    %v2065 = vmul.f32 %v2047, %v2063
    %v2066 = vsub.f32 %v2064, %v2065
    %v2068 = vlaneseq
    %v2069 = vshrl.u32 %v2068, 7
    %v2070 = vsub.s32 0, %v2069
    %v2071 = vrot.slane %v2063, %v2070
    %v2073 = vmul.f32 %v2035, %v2071
    %v2075 = vlaneseq
    %v2076 = vshrl.u32 %v2075, 7
    %v2077 = vsub.s32 0, %v2076
    %v2078 = vrot.slane %v2066, %v2077
    %v2080 = vadd.f32 %v2073, %v2078
    %v2081 = vmax.f32 %v2080, 0.0
    %v2082 = vpack.c.bf16 %v2081, %v2081
    %v2083 = vld [vmem:[%s61] sm:$0xf]
    %v2084 = vld [vmem:[%s61 + $0x4] sm:$0xf]
    %v2085 = vld [vmem:[%s61 + $0x8] sm:$0xf]
    %v2086 = vld [vmem:[%s61 + $0xc] sm:$0xf]
    %v2087 = vld [vmem:[%s61 + $0x10] sm:$0xf]
    %v2088 = vld [vmem:[%s61 + $0x14] sm:$0xf]
    %v2089 = vld [vmem:[%s61 + $0x18] sm:$0xf]
    %v2090 = vld [vmem:[%s61 + $0x1c] sm:$0xf]
    %v2091 = vld [vmem:[%s61 + $0x20] sm:$0xf]
    %v2092 = vld [vmem:[%s61 + $0x24] sm:$0xf]
    %v2093 = vld [vmem:[%s61 + $0x28] sm:$0xf]
    %v2094 = vld [vmem:[%s61 + $0x2c] sm:$0xf]
    %v2095 = vld [vmem:[%s61 + $0x30] sm:$0xf]
    %v2096 = vld [vmem:[%s61 + $0x34] sm:$0xf]
    %v2097 = vld [vmem:[%s61 + $0x38] sm:$0xf]
    %v2098 = vld [vmem:[%s61 + $0x3c] sm:$0xf]
    %v2099 = vld [vmem:[%s63] sm:$0x1]
    %v2101 = vlaneseq
    %v2102 = vshrl.u32 %v2101, 7
    %v2103 = vsub.s32 0, %v2102
    %v2104 = vrot.slane %v2099, %v2103
    %v2122 = vunpack.c.l.b16 %v2083
    %v2123 = vunpack.c.l.b16 %v2084
    %v2124 = vunpack.c.l.b16 %v2085
    %v2125 = vunpack.c.l.b16 %v2086
    %v2126 = vunpack.c.l.b16 %v2087
    %v2127 = vunpack.c.l.b16 %v2088
    %v2128 = vunpack.c.l.b16 %v2089
    %v2129 = vunpack.c.l.b16 %v2090
    %v2130 = vunpack.c.l.b16 %v2091
    %v2131 = vunpack.c.l.b16 %v2092
    %v2132 = vunpack.c.l.b16 %v2093
    %v2133 = vunpack.c.l.b16 %v2094
    %v2134 = vunpack.c.l.b16 %v2095
    %v2135 = vunpack.c.l.b16 %v2096
    %v2136 = vunpack.c.l.b16 %v2097
    %v2137 = vunpack.c.l.b16 %v2098
    %v2138 = vpack.c.b16 %v2123, %v2122
    %v2139 = vpack.c.b16 %v2125, %v2124
    %v2140 = vpack.c.b16 %v2127, %v2126
    %v2141 = vpack.c.b16 %v2129, %v2128
    %v2142 = vpack.c.b16 %v2131, %v2130
    %v2143 = vpack.c.b16 %v2133, %v2132
    %v2144 = vpack.c.b16 %v2135, %v2134
    %v2145 = vpack.c.b16 %v2137, %v2136
    %2154 = vmatprep.subr.bf16.mxu0 0
    %2155 = vmatpush1.bf16.msra.mxu0 %v2145
    %2156 = vmatprep.subr.bf16.mxu0 0
    %2157 = vmatpush1.bf16.msra.mxu0 %v2144
    %2158 = vmatprep.subr.bf16.mxu0 0
    %2159 = vmatpush1.bf16.msra.mxu0 %v2143
    %2160 = vmatprep.subr.bf16.mxu0 0
    %2161 = vmatpush1.bf16.msra.mxu0 %v2142
    %2162 = vmatprep.subr.bf16.mxu0 0
    %2163 = vmatpush1.bf16.msra.mxu0 %v2141
    %2164 = vmatprep.subr.bf16.mxu0 0
    %2165 = vmatpush1.bf16.msra.mxu0 %v2140
    %2166 = vmatprep.subr.bf16.mxu0 0
    %2167 = vmatpush1.bf16.msra.mxu0 %v2139
    %2168 = vmatprep.subr.bf16.mxu0 0
    %2169 = vmatpush1.bf16.msra.mxu0 %v2138
    %2170 = vmatprep.subr.bf16.mxu0 0
    %2171 = vmatpush2.bf16.msra.mxu0 0
    %2172 = vmatprep.subr.bf16.mxu0 0
    %2173 = vmatpush2.bf16.msra.mxu0 0
    %2174 = vmatprep.subr.bf16.mxu0 0
    %2175 = vmatpush2.bf16.msra.mxu0 0
    %2176 = vmatprep.subr.bf16.mxu0 0
    %2177 = vmatpush2.bf16.msra.mxu0 0
    %2178 = vmatprep.subr.bf16.mxu0 0
    %2179 = vmatpush2.bf16.msra.mxu0 0
    %2180 = vmatprep.subr.bf16.mxu0 0
    %2181 = vmatpush2.bf16.msra.mxu0 0
    %2182 = vmatprep.subr.bf16.mxu0 0
    %2183 = vmatpush2.bf16.msra.mxu0 0
    %2184 = vmatprep.subr.bf16.mxu0 0
    %2185 = vmatpush2.bf16.msra.mxu0 0
    %2186 = vmatprep.mubr.bf16.mxu0 0
    %2187 = vmatmul.mubr.bf16.gmra.mxu0 %v2082
    %v2188 = vpop.f32.mrf.mxu0
    %v2189 = vadd.f32 %v2104, %v2188
    %v2190 = vpop.f32.mrf.mxu0
    %v2191 = vpop.f32.mrf.mxu0
    %v2192 = vpop.f32.mrf.mxu0
    %2193 = vdwg.mxu0
    %s2194 = scalar_lea.vmem [#allocation4], 2
    %2195 = vst [vmem:[%s2194] sm:$0x3] %v2189
    // Predicated region
    $region130: #{byol_forward.1} parent=1 // pred_check
      _
    $region131: #{byol_forward.1} parent=1 // pred_check_branch
      %2197 = sbr.rel (0) target = $region133
    $region132: #{byol_forward.1} parent=1 // pred_region
      %s2199 = ssub.s32 64, 64
      %2200 = vsyncadd [#allocation3], %s2199
      %s2201 = sshll.u32 [#allocation2], 4
      %s2202 = int_to_ptr.vmem [resolvable:$true] %s2201
      %2207 = dma.vmem_to_hbm [thread:$0]  %s2202, 64, %s65, [#allocation3], 32, 32, 2
    $region133: #{byol_forward.1} parent=1 // pred_fallthru
      _
    // Predicated region
    $region134: #{byol_forward.1} parent=1 // pred_check
      _
    $region135: #{byol_forward.1} parent=1 // pred_check_branch
      %2209 = sbr.rel (0) target = $region137
    $region136: #{byol_forward.1} parent=1 // pred_region
      %s2211 = ssub.s32 64, 64
      %2212 = vsyncadd [#allocation5], %s2211
      %s2213 = sshll.u32 [#allocation4], 4
      %s2214 = int_to_ptr.vmem [resolvable:$true] %s2213
      %2219 = dma.vmem_to_hbm [thread:$0]  %s2214, 64, %s67, [#allocation5], 32, 32, 2
    $region137: #{byol_forward.1} parent=1 // pred_fallthru
      _
    // Predicated region
    $region138: #{byol_forward.1} parent=1 // pred_check
      _
    $region139: #{byol_forward.1} parent=1 // pred_check_branch
      %2221 = sbr.rel (0) target = $region141
    $region140: #{byol_forward.1} parent=1 // pred_region
      %2222 = dma.done [#allocation3], 64
    $region141: #{byol_forward.1} parent=1 // pred_fallthru
      _
    // Predicated region
    $region142: #{byol_forward.1} parent=1 // pred_check
      _
    $region143: #{byol_forward.1} parent=1 // pred_check_branch
      %2224 = sbr.rel (0) target = $region145
    $region144: #{byol_forward.1} parent=1 // pred_region
      %2225 = dma.done [#allocation5], 64
    $region145: #{byol_forward.1} parent=1 // pred_fallthru
      _
    %2226 = vsyncpa [#allocation3], 1
    %2227 = vsyncpa [#allocation5], 1

</llo_original>
